<compile_context>
chip_gen: v7x
topology: tpu7x:2x2x1
jax: 0.10.0
libtpu: 0.0.40
codegen_flags: <defaults>
</compile_context>

<pallas_src>
import jax
import jax.numpy as jnp
import numpy as np
from jax import lax
from jax.experimental import pallas as pl
from jax.experimental.pallas import tpu as pltpu


def _unpool_kernel(s_ref, z_ref, e_ref, q_ref, o_ref):
    """One grid step: scatter pooled values of a (c_blk, n_blk) tile into the
    lane-dense unpooled output block.

    s_ref: (B, Cb, nbm)  f32  pooled values, (n_blk, m) folded into lanes
    z_ref: (Cb, nbm)     f32  sampled slot per pooling window (exact small ints)
    e_ref: (nbm, nbL)    f32  0/1 lane-expansion matrix (grid-invariant)
    q_ref: (1,  nbL)     f32  slot index addressed by each output lane
    o_ref: (B, Cb, nbL)       nbL = n_blk * p_x * m * p_y  (lane-dense)
    """
    B = s_ref.shape[0]
    E = e_ref[...]

    # Lane-expand zeta with one tiny bf16 MXU pass (exact: small integers).
    z_up = jnp.dot(z_ref[...].astype(jnp.bfloat16), E.astype(jnp.bfloat16),
                   preferred_element_type=jnp.float32)              # (Cb, nbL)
    hit = q_ref[...] == z_up                                        # (Cb, nbL)

    # Per batch element: expand s to lanes (exact f32 pass-through: HIGHEST
    # precision + E has exactly one 1 per column) and do a single unmasked
    # lane-dense full-block store.  The short loop also bounds live temporaries.
    for b in range(B):
        s_up = jnp.dot(s_ref[b], E,
                       preferred_element_type=jnp.float32,
                       precision=lax.Precision.HIGHEST)             # (Cb, nbL)
        o_ref[b] = jnp.where(hit, s_up, 0.0).astype(o_ref.dtype)


def _min_grid_steps():
    # v7x has 2 TensorCores per chip: keep >= 4 'parallel' steps so both stay
    # fed.  Single-TC chips (v5e/v6e): fewest, biggest steps wins (~0.35us/step).
    try:
        kind = jax.devices()[0].device_kind.lower()
    except Exception:
        kind = ""
    return 4 if "v7" in kind else 1


def _choose_blocks(B, C, n, m, p_x, p_y, *, min_steps,
                   target_bytes=16 << 20, e_cap_bytes=4 << 20, itemsize=4):
    """Pick (c_blk, n_blk): large double-buffered footprint (~target_bytes),
    every BlockSpec obeys the (8,128) rule, and on v7x the grid keeps
    >= min_steps steps when C allows it."""
    L = p_x * p_y * m                                   # unpooled lanes per pooled row

    # n blocking: keep the whole n unless the block-local expansion matrix E
    # would get huge; sub-blocks must keep n_blk*m a multiple of 128 so the
    # folded lane BlockSpecs stay tile-aligned.
    n_blk = n
    if n * m * n * L * itemsize > e_cap_bytes:
        for d in range(n - 1, 0, -1):
            if n % d == 0 and (d * m) % 128 == 0 and d * m * d * L * itemsize <= e_cap_bytes:
                n_blk = d
                break
    gn = n // n_blk

    def footprint(cb):   # double-buffered VMEM footprint of one grid step
        s_b = B * cb * n_blk * m
        z_b = cb * n_blk * m
        o_b = B * cb * n_blk * L
        e_b = n_blk * m * n_blk * L + n_blk * L
        return 2 * itemsize * (s_b + z_b + o_b + e_b)

    # Channel block candidates: whole C, or a multiple of 8 (sublane aligned);
    # tail handled by zero-padding C, so no exact-divisor requirement.
    cands = sorted({C} | set(range(8, C, 8)), reverse=True)
    fitting = [cb for cb in cands if footprint(cb) <= target_bytes] or [cands[-1]]
    c_blk = fitting[0]                                  # biggest tile that fits
    if min_steps > 1:                                   # v7x: keep both TCs busy
        for cb in fitting:
            if pl.cdiv(C, cb) * gn >= min_steps:
                c_blk = cb
                break
    gc = pl.cdiv(C, c_blk)
    return c_blk, n_blk, gc, gn, gc * c_blk, L, footprint(c_blk)


def _expansion_constants(m, p_x, p_y, n_blk):
    """Grid-invariant constants: 0/1 lane-expansion matrix E (nbm, nbL) and the
    slot index q addressed by each output lane (1, nbL).

    Output lane f (within an n-block) decomposes as f = i*L + px*W + j*p_y + py
    with W = m*p_y, L = p_x*W.  E[x, f] = 1 iff x == i*m + j; q[f] = px*p_y+py.
    """
    W = m * p_y
    L = p_x * W
    nbm, nbL = n_blk * m, n_blk * L
    x = np.arange(nbm)
    f = np.arange(nbL)
    same_row = (f[None, :] // L) == (x[:, None] // m)
    same_col = ((f[None, :] % W) // p_y) == (x[:, None] % m)
    E = (same_row & same_col).astype(np.float32)                       # (nbm, nbL)
    q = (((f % L) // W) * p_y + (f % p_y)).astype(np.float32)[None]    # (1, nbL)
    return jnp.asarray(E), jnp.asarray(q)


def unpool(s, etas, p_x, p_y, sample_key, *, out_dtype=jnp.float32):
    """Pallas equivalent of Unpool(p_x, p_y).forward(s, etas).

    s:    (B, C, n, m) float
    etas: (n*m*C, p_x*p_y) positive floats; row order cnt = (i*m + j)*C + k.
          (All-zero eta rows are undefined, as for torch.multinomial.)
    Returns (out, zeta): out (B, C, n*p_x, m*p_y), zeta (C, n, m) int32.
    """
    B, C, n, m = s.shape

    # --- glue: one multinomial draw per (i, j, k) window (shared across batch,
    #     matching the reference loop's single zeta per window).
    zeta_flat = jax.random.categorical(sample_key, jnp.log(etas), axis=-1)
    zeta = zeta_flat.reshape(n, m, C).transpose(2, 0, 1).astype(jnp.int32)   # (C,n,m)

    min_steps = _min_grid_steps()
    c_blk, n_blk, gc, gn, C_pad, L, fp = _choose_blocks(
        B, C, n, m, p_x, p_y, min_steps=min_steps)
    nbm, nbL = n_blk * m, n_blk * L

    E, q = _expansion_constants(m, p_x, p_y, n_blk)

    # Host-side FREE reshapes: fold (n, m) into the lane axis for the kernel.
    s3 = s.astype(jnp.float32).reshape(B, C, n * m)
    z2 = zeta.reshape(C, n * m).astype(jnp.float32)      # exact small ints
    if C_pad != C:
        s3 = jnp.pad(s3, ((0, 0), (0, C_pad - C), (0, 0)))
        z2 = jnp.pad(z2, ((0, C_pad - C), (0, 0)))

    # Explicit VMEM budget: comfortably above the double-buffered footprint,
    # capped below v7x's 64 MiB physical VMEM (v5e/v6e have 128 MiB physical).
    vmem_limit = min(max(2 * fp, 32 << 20), 40 << 20)
    vmem_limit = max(vmem_limit, fp + (2 << 20))

    out3 = pl.pallas_call(
        _unpool_kernel,
        out_shape=jax.ShapeDtypeStruct((B, C_pad, n * L), out_dtype),
        grid_spec=pltpu.PrefetchScalarGridSpec(
            num_scalar_prefetch=0,
            grid=(gc, gn),
            in_specs=[
                pl.BlockSpec((B, c_blk, nbm), lambda c, t: (0, c, t)),
                pl.BlockSpec((c_blk, nbm), lambda c, t: (c, t)),
                pl.BlockSpec((nbm, nbL), lambda c, t: (0, 0)),   # grid-invariant E
                pl.BlockSpec((1, nbL), lambda c, t: (0, 0)),     # grid-invariant q
            ],
            out_specs=pl.BlockSpec((B, c_blk, nbL), lambda c, t: (0, c, t)),
        ),
        compiler_params=pltpu.CompilerParams(
            dimension_semantics=("parallel", "parallel"),
            vmem_limit_bytes=int(vmem_limit)),
    )(s3, z2, E, q)

    if C_pad != C:
        out3 = out3[:, :C, :]
    # Free contiguous reshape: memory order already matches NCHW output.
    out = out3.reshape(B, C, n * p_x, m * p_y)
    # TODO(synk): call with out_dtype=jnp.bfloat16 if downstream tolerates it —
    # the kernel is HBM-write-bound, so halving output bytes is ~2x end-to-end.
    return out, zeta


def _reference_unpool(s_np, zeta_np, p_x, p_y):
    """Pure-numpy reference matching the PyTorch loop semantics."""
    B, C, n, m = s_np.shape
    out = np.zeros((B, C, n * p_x, m * p_y), dtype=np.float32)
    for i in range(n):
        for j in range(m):
            for k in range(C):
                qq = int(zeta_np[k, i, j])
                px, py = qq // p_y, qq % p_y
                out[:, k, i * p_x + px, j * p_y + py] = s_np[:, k, i, j]
    return out


if __name__ == "__main__":
    B, C, n, m = 2, 4, 8, 8
    p_x, p_y = 2, 2

    key = jax.random.PRNGKey(0)
    k_s, k_eta, k_sample = jax.random.split(key, 3)

    s = jax.random.normal(k_s, (B, C, n, m), dtype=jnp.float32)
    etas = jax.random.uniform(
        k_eta, (n * m * C, p_x * p_y), minval=0.1, maxval=1.0, dtype=jnp.float32
    )

    out, zeta = unpool(s, etas, p_x, p_y, k_sample)
    out = jax.block_until_ready(out)

    ref = _reference_unpool(np.asarray(s), np.asarray(zeta), p_x, p_y)
    np.testing.assert_allclose(np.asarray(out), ref, rtol=1e-6, atol=1e-6)
    assert out.shape == (B, C, n * p_x, m * p_y)
    print("KERNEL_OK")
</pallas_src>

<mosaic_0001>
module attributes {stable_mosaic.version = 11 : i64} {
  func.func @_unpool_kernel(%arg0: i32, %arg1: i32, %arg2: memref<2x4x64xf32, #tpu.memory_space<vmem>>, %arg3: memref<4x64xf32, #tpu.memory_space<vmem>>, %arg4: memref<64x256xf32, #tpu.memory_space<vmem>>, %arg5: memref<1x256xf32, #tpu.memory_space<vmem>>, %arg6: memref<2x4x256xf32, #tpu.memory_space<vmem>>) attributes {dimension_semantics = [#tpu.dimension_semantics<parallel>, #tpu.dimension_semantics<parallel>], iteration_bounds = array<i64: 1, 1>, scalar_prefetch = 0 : i64, scratch_operands = 0 : i64, tpu.core_type = #tpu.core_type<tc>, window_params = [{transform_indices = @transform_0, window_bounds = array<i64: 2, 4, 64>}, {transform_indices = @transform_1, window_bounds = array<i64: 4, 64>}, {pipeline_mode = #tpu.pipeline_mode<synchronous>, transform_indices = @transform_2, window_bounds = array<i64: 64, 256>}, {pipeline_mode = #tpu.pipeline_mode<synchronous>, transform_indices = @transform_3, window_bounds = array<i64: 1, 256>}, {transform_indices = @transform_4, window_bounds = array<i64: 2, 4, 256>}]} {
    %c0 = arith.constant 0 : index
    %c0_0 = arith.constant 0 : index
    %0 = vector.load %arg4[%c0, %c0_0] : memref<64x256xf32, #tpu.memory_space<vmem>>, vector<64x256xf32>
    %c0_1 = arith.constant 0 : index
    %c0_2 = arith.constant 0 : index
    %1 = vector.load %arg3[%c0_1, %c0_2] : memref<4x64xf32, #tpu.memory_space<vmem>>, vector<4x64xf32>
    %2 = arith.truncf %1 : vector<4x64xf32> to vector<4x64xbf16>
    %3 = arith.truncf %0 : vector<64x256xf32> to vector<64x256xbf16>
    %cst = arith.constant dense<0.000000e+00> : vector<4x256xf32>
    %4 = tpu.matmul %2, %3, %cst {dimension_numbers = #tpu.dot_dimension_numbers<[1], [0], [0], [1], [0, 0, 1, 1], [], []>} : vector<4x64xbf16>, vector<64x256xbf16>, vector<4x256xf32> -> vector<4x256xf32>
    %c0_3 = arith.constant 0 : index
    %c0_4 = arith.constant 0 : index
    %5 = vector.load %arg5[%c0_3, %c0_4] : memref<1x256xf32, #tpu.memory_space<vmem>>, vector<1x256xf32>
    %6 = vector.broadcast %5 : vector<1x256xf32> to vector<4x256xf32>
    %7 = arith.cmpf oeq, %6, %4 : vector<4x256xf32>
    %c0_5 = arith.constant 0 : index
    %c0_6 = arith.constant 0 : index
    %c0_7 = arith.constant 0 : index
    %8 = vector.load %arg2[%c0_5, %c0_6, %c0_7] : memref<2x4x64xf32, #tpu.memory_space<vmem>>, vector<1x4x64xf32>
    %9 = vector.shape_cast %8 : vector<1x4x64xf32> to vector<4x64xf32>
    %cst_8 = arith.constant dense<0.000000e+00> : vector<4x256xf32>
    %10 = tpu.matmul %9, %0, %cst_8 {dimension_numbers = #tpu.dot_dimension_numbers<[1], [0], [0], [1], [0, 0, 1, 1], [], []>, precision = #tpu.contract_precision<fp32>} : vector<4x64xf32>, vector<64x256xf32>, vector<4x256xf32> -> vector<4x256xf32>
    %cst_9 = arith.constant 0.000000e+00 : f32
    %11 = vector.broadcast %cst_9 : f32 to vector<4x256xf32>
    %12 = arith.select %7, %10, %11 : vector<4x256xi1>, vector<4x256xf32>
    %c0_10 = arith.constant 0 : index
    %c0_11 = arith.constant 0 : index
    %c0_12 = arith.constant 0 : index
    %13 = vector.load %arg6[%c0_10, %c0_11, %c0_12] : memref<2x4x256xf32, #tpu.memory_space<vmem>>, vector<1x4x256xf32>
    %14 = vector.shape_cast %13 : vector<1x4x256xf32> to vector<4x256xf32>
    %15 = vector.shape_cast %12 : vector<4x256xf32> to vector<1x4x256xf32>
    tpu.vector_store %arg6[%c0_10, %c0_11, %c0_12], %15 {strides = array<i32>} : memref<2x4x256xf32, #tpu.memory_space<vmem>>, vector<1x4x256xf32>,
    %c1 = arith.constant 1 : index
    %c0_13 = arith.constant 0 : index
    %c0_14 = arith.constant 0 : index
    %16 = vector.load %arg2[%c1, %c0_13, %c0_14] : memref<2x4x64xf32, #tpu.memory_space<vmem>>, vector<1x4x64xf32>
    %17 = vector.shape_cast %16 : vector<1x4x64xf32> to vector<4x64xf32>
    %cst_15 = arith.constant dense<0.000000e+00> : vector<4x256xf32>
    %18 = tpu.matmul %17, %0, %cst_15 {dimension_numbers = #tpu.dot_dimension_numbers<[1], [0], [0], [1], [0, 0, 1, 1], [], []>, precision = #tpu.contract_precision<fp32>} : vector<4x64xf32>, vector<64x256xf32>, vector<4x256xf32> -> vector<4x256xf32>
    %cst_16 = arith.constant 0.000000e+00 : f32
    %19 = vector.broadcast %cst_16 : f32 to vector<4x256xf32>
    %20 = arith.select %7, %18, %19 : vector<4x256xi1>, vector<4x256xf32>
    %c1_17 = arith.constant 1 : index
    %c0_18 = arith.constant 0 : index
    %c0_19 = arith.constant 0 : index
    %21 = vector.load %arg6[%c1_17, %c0_18, %c0_19] : memref<2x4x256xf32, #tpu.memory_space<vmem>>, vector<1x4x256xf32>
    %22 = vector.shape_cast %21 : vector<1x4x256xf32> to vector<4x256xf32>
    %23 = vector.shape_cast %20 : vector<4x256xf32> to vector<1x4x256xf32>
    tpu.vector_store %arg6[%c1_17, %c0_18, %c0_19], %23 {strides = array<i32>} : memref<2x4x256xf32, #tpu.memory_space<vmem>>, vector<1x4x256xf32>,
    return
  }
  func.func @transform_0(%arg0: i32, %arg1: i32) -> (i32, i32, i32) {
    %c0_i32 = arith.constant 0 : i32
    %c0_i32_0 = arith.constant 0 : i32
    return %c0_i32, %arg0, %arg1 : i32, i32, i32
  }
  func.func @transform_1(%arg0: i32, %arg1: i32) -> (i32, i32) {
    %c0_i32 = arith.constant 0 : i32
    return %arg0, %arg1 : i32, i32
  }
  func.func @transform_2(%arg0: i32, %arg1: i32) -> (i32, i32) {
    %c0_i32 = arith.constant 0 : i32
    %c0_i32_0 = arith.constant 0 : i32
    %c0_i32_1 = arith.constant 0 : i32
    return %c0_i32, %c0_i32_0 : i32, i32
  }
  func.func @transform_3(%arg0: i32, %arg1: i32) -> (i32, i32) {
    %c0_i32 = arith.constant 0 : i32
    %c0_i32_0 = arith.constant 0 : i32
    %c0_i32_1 = arith.constant 0 : i32
    return %c0_i32, %c0_i32_0 : i32, i32
  }
  func.func @transform_4(%arg0: i32, %arg1: i32) -> (i32, i32, i32) {
    %c0_i32 = arith.constant 0 : i32
    %c0_i32_0 = arith.constant 0 : i32
    return %c0_i32, %arg0, %arg1 : i32, i32, i32
  }
}

</mosaic_0001>

<llo_original>
// kernel: tpu_custom_call.1
$region0: #{tpu_custom_call.1}
  #allocation0 [shape = 'u32[]', space=smem, size = 0x4, offset = 0x4, fixed_abs, tag = 'smem constant byte address 0x4 - core index']
  #allocation1 [shape = 'u32[144,128]{1,0:T(1,128)}', space=vmem, size = 0x12000, scoped, tag = 'internal scratch']
  %s0 = inlined_call_operand.hbm [shape: f32[2,4,64], index: 0, kind: input, shape index: {}]
  %s1 = inlined_call_operand.hbm [shape: f32[4,64], index: 1, kind: input, shape index: {}]
  %s2 = inlined_call_operand.hbm [shape: f32[64,256], index: 2, kind: input, shape index: {}]
  %s3 = inlined_call_operand.vmem [shape: f32[1,256], index: 3, kind: input, shape index: {}]
  %s4 = inlined_call_operand.hbm [shape: f32[2,4,256], index: 4, kind: output, shape index: {}]
  %s5 = sld [smem:[#allocation0]]
  $region38: #{tpu_custom_call.1} parent=0
    _
  %s7 = ssub.s32 1, %s5
  %s8 = scalar_select 0, %s7, %s5
  $region1: #{tpu_custom_call.1} parent=0
    #allocation2 [shape = 'u8[4096]{0}', space=vmem, size = 0x1000, scoped, tag = 'input window, operand 0, single buffered']
    #allocation3 [shape = 's32[1]{0}', space=sflag, size = 0x4, scoped, tag = 'scoped memory for tpu_custom_call.1']
    #allocation4 [shape = 's32[1]{0}', space=sflag, size = 0x4, scoped, tag = 'scoped memory for tpu_custom_call.1']
    #allocation5 [shape = 'u8[2048]{0}', space=vmem, size = 0x800, scoped, tag = 'input window, operand 1, single buffered']
    #allocation6 [shape = 's32[1]{0}', space=sflag, size = 0x4, scoped, tag = 'scoped memory for tpu_custom_call.1']
    #allocation7 [shape = 'u8[65536]{0}', space=vmem, size = 0x10000, scoped, tag = 'input window, operand 2, single buffered']
    #allocation8 [shape = 'u8[8192]{0}', space=vmem, size = 0x2000, scoped, tag = 'output window, operand 0, single buffered']
    %9 = vsyncpa [#allocation3], 0
    %10 = vsyncpa [#allocation6], 0
    %11 = vsyncpa [#allocation4], 0
    // Predicated region
    $region2: #{tpu_custom_call.1} parent=1 // pred_check
      _
    $region3: #{tpu_custom_call.1} parent=1 // pred_check_branch
      %13 = sbr.rel (0) target = $region5
    $region4: #{tpu_custom_call.1} parent=1 // pred_region
      %s15 = ssub.s32 128, 128
      %16 = vsyncadd [#allocation3], %s15
      %s17 = sshll.u32 [#allocation2], 4
      %s18 = int_to_ptr.vmem [resolvable:$true] %s17
      %23 = dma.hbm_to_vmem [thread:$0]  %s0, 128, %s18, [#allocation3], 64, 64, 4
    $region5: #{tpu_custom_call.1} parent=1 // pred_fallthru
      _
    // Predicated region
    $region6: #{tpu_custom_call.1} parent=1 // pred_check
      _
    $region7: #{tpu_custom_call.1} parent=1 // pred_check_branch
      %25 = sbr.rel (0) target = $region9
    $region8: #{tpu_custom_call.1} parent=1 // pred_region
      %s27 = ssub.s32 64, 64
      %28 = vsyncadd [#allocation6], %s27
      %s30 = sshll.u32 [#allocation5], 4
      %s31 = int_to_ptr.vmem [resolvable:$true] %s30
      %33 = dma.hbm_to_vmem [thread:$0]  %s1, 64, %s31, [#allocation6]
    $region9: #{tpu_custom_call.1} parent=1 // pred_fallthru
      _
    // Predicated region
    $region10: #{tpu_custom_call.1} parent=1 // pred_check
      _
    $region11: #{tpu_custom_call.1} parent=1 // pred_check_branch
      %35 = sbr.rel (0) target = $region13
    $region12: #{tpu_custom_call.1} parent=1 // pred_region
      %s37 = ssub.s32 2048, 2048
      %38 = vsyncadd [#allocation6], %s37
      %s39 = sshll.u32 [#allocation7], 4
      %s40 = int_to_ptr.vmem [resolvable:$true] %s39
      %45 = dma.hbm_to_vmem [thread:$0]  %s2, 2048, %s40, [#allocation6], 256, 256, 16
    $region13: #{tpu_custom_call.1} parent=1 // pred_fallthru
      _
    // Predicated region
    $region14: #{tpu_custom_call.1} parent=1 // pred_check
      _
    $region15: #{tpu_custom_call.1} parent=1 // pred_check_branch
      %47 = sbr.rel (0) target = $region17
    $region16: #{tpu_custom_call.1} parent=1 // pred_region
      _
    $region17: #{tpu_custom_call.1} parent=1 // pred_fallthru
      _
    // Predicated region
    $region18: #{tpu_custom_call.1} parent=1 // pred_check
      _
    $region19: #{tpu_custom_call.1} parent=1 // pred_check_branch
      %49 = sbr.rel (0) target = $region21
    $region20: #{tpu_custom_call.1} parent=1 // pred_region
      %50 = dma.done [#allocation3], 128
    $region21: #{tpu_custom_call.1} parent=1 // pred_fallthru
      _
    // Predicated region
    $region22: #{tpu_custom_call.1} parent=1 // pred_check
      _
    $region23: #{tpu_custom_call.1} parent=1 // pred_check_branch
      %52 = sbr.rel (0) target = $region25
    $region24: #{tpu_custom_call.1} parent=1 // pred_region
      %53 = dma.done [#allocation6], 64
    $region25: #{tpu_custom_call.1} parent=1 // pred_fallthru
      _
    // Predicated region
    $region26: #{tpu_custom_call.1} parent=1 // pred_check
      _
    $region27: #{tpu_custom_call.1} parent=1 // pred_check_branch
      %55 = sbr.rel (0) target = $region29
    $region28: #{tpu_custom_call.1} parent=1 // pred_region
      %56 = dma.done [#allocation6], 2048
    $region29: #{tpu_custom_call.1} parent=1 // pred_fallthru
      _
    %v58 = vld [vmem:[#allocation7] sm:$0xff]
    %v59 = vld [vmem:[#allocation7 + $0x8] sm:$0xff]
    %v60 = vld [vmem:[#allocation7 + $0x10] sm:$0xff]
    %v61 = vld [vmem:[#allocation7 + $0x18] sm:$0xff]
    %v62 = vld [vmem:[#allocation7 + $0x20] sm:$0xff]
    %v63 = vld [vmem:[#allocation7 + $0x28] sm:$0xff]
    %v64 = vld [vmem:[#allocation7 + $0x30] sm:$0xff]
    %v65 = vld [vmem:[#allocation7 + $0x38] sm:$0xff]
    %v66 = vld [vmem:[#allocation7 + $0x40] sm:$0xff]
    %v67 = vld [vmem:[#allocation7 + $0x48] sm:$0xff]
    %v68 = vld [vmem:[#allocation7 + $0x50] sm:$0xff]
    %v69 = vld [vmem:[#allocation7 + $0x58] sm:$0xff]
    %v70 = vld [vmem:[#allocation7 + $0x60] sm:$0xff]
    %v71 = vld [vmem:[#allocation7 + $0x68] sm:$0xff]
    %v72 = vld [vmem:[#allocation7 + $0x70] sm:$0xff]
    %v73 = vld [vmem:[#allocation7 + $0x78] sm:$0xff]
    %v74 = vld [vmem:[#allocation5] sm:$0xf]
    %v75 = vpack.c.bf16 %v74, %v74
    %v76 = vpack.c.bf16 %v60, %v58
    %v77 = vpack.c.bf16 %v61, %v59
    %v78 = vpack.c.bf16 %v64, %v62
    %v79 = vpack.c.bf16 %v65, %v63
    %v80 = vpack.c.bf16 %v68, %v66
    %v81 = vpack.c.bf16 %v69, %v67
    %v82 = vpack.c.bf16 %v72, %v70
    %v83 = vpack.c.bf16 %v73, %v71
    %vm84 = vcmask 523264
    %v86 = vsel %vm84, %v75, 0
    %88 = vmatprep.subr.bf16.mxu0 %v77
    %89 = vmatpush1.bf16.msra.mxu0 %v76
    %90 = vmatprep.subr.bf16.mxu0 %v79
    %91 = vmatpush1.bf16.msra.mxu0 %v78
    %92 = vmatprep.subr.bf16.mxu0 %v81
    %93 = vmatpush1.bf16.msra.mxu0 %v80
    %94 = vmatprep.subr.bf16.mxu0 %v83
    %95 = vmatpush1.bf16.msra.mxu0 %v82
    %96 = vmatprep.subr.bf16.mxu0 0
    %97 = vmatpush1.bf16.msra.mxu0 0
    %98 = vmatprep.subr.bf16.mxu0 0
    %99 = vmatpush1.bf16.msra.mxu0 0
    %100 = vmatprep.subr.bf16.mxu0 0
    %101 = vmatpush1.bf16.msra.mxu0 0
    %102 = vmatprep.subr.bf16.mxu0 0
    %103 = vmatpush1.bf16.msra.mxu0 0
    %104 = vmatprep.subr.bf16.mxu0 0
    %105 = vmatpush1.bf16.msra.mxu0 0
    %106 = vmatprep.subr.bf16.mxu0 0
    %107 = vmatpush1.bf16.msra.mxu0 0
    %108 = vmatprep.subr.bf16.mxu0 0
    %109 = vmatpush1.bf16.msra.mxu0 0
    %110 = vmatprep.subr.bf16.mxu0 0
    %111 = vmatpush1.bf16.msra.mxu0 0
    %112 = vmatprep.subr.bf16.mxu0 0
    %113 = vmatpush1.bf16.msra.mxu0 0
    %114 = vmatprep.subr.bf16.mxu0 0
    %115 = vmatpush1.bf16.msra.mxu0 0
    %116 = vmatprep.subr.bf16.mxu0 0
    %117 = vmatpush1.bf16.msra.mxu0 0
    %118 = vmatprep.subr.bf16.mxu0 0
    %119 = vmatpush1.bf16.msra.mxu0 0
    %120 = vmatprep.mubr.bf16.mxu0 0
    %121 = vmatmul.mubr.bf16.gmra.mrb[0].mxu0 %v86
    %v122 = vpop.f32.mrb[0].mxu0
    %v123 = vadd.f32 0.0, %v122
    %v124 = vpop.f32.mrb[0].mxu0
    %v125 = vadd.f32 0.0, %v124
    %v126 = vpop.f32.mrb[0].mxu0
    %v127 = vpop.f32.mrb[0].mxu0
    %128 = vdwg.mxu0
    %v129 = vld [vmem:[%s3] sm:$0x3]
    %v131 = vlaneseq
    %v132 = vshrl.u32 %v131, 7
    %v133 = vsub.s32 0, %v132
    %v134 = vrot.slane %v129, %v133
    %v135 = vlaneseq
    %v136 = vshrl.u32 %v135, 7
    %v137 = vsub.s32 1, %v136
    %v138 = vrot.slane %v129, %v137
    %vm141 = vcmp.eq.f32.partialorder %v134, %v123
    %vm142 = vcmp.eq.f32.partialorder %v138, %v125
    %v143 = vld [vmem:[#allocation2] sm:$0xf]
    %v145 = vsel %vm84, %v143, 0
    %v147 = vand.u32 %v59, 4294901760
    %148 = vmatprep.subr.mxu0 %v147
    %v149 = vand.u32 %v58, 4294901760
    %150 = vmatpush1.msra.mxu0 %v149
    %v151 = vand.u32 %v61, 4294901760
    %152 = vmatprep.subr.mxu0 %v151
    %v153 = vand.u32 %v60, 4294901760
    %154 = vmatpush1.msra.mxu0 %v153
    %v155 = vand.u32 %v63, 4294901760
    %156 = vmatprep.subr.mxu0 %v155
    %v157 = vand.u32 %v62, 4294901760
    %158 = vmatpush1.msra.mxu0 %v157
    %v159 = vand.u32 %v65, 4294901760
    %160 = vmatprep.subr.mxu0 %v159
    %v161 = vand.u32 %v64, 4294901760
    %162 = vmatpush1.msra.mxu0 %v161
    %v163 = vand.u32 %v67, 4294901760
    %164 = vmatprep.subr.mxu0 %v163
    %v165 = vand.u32 %v66, 4294901760
    %166 = vmatpush1.msra.mxu0 %v165
    %v167 = vand.u32 %v69, 4294901760
    %168 = vmatprep.subr.mxu0 %v167
    %v169 = vand.u32 %v68, 4294901760
    %170 = vmatpush1.msra.mxu0 %v169
    %v171 = vand.u32 %v71, 4294901760
    %172 = vmatprep.subr.mxu0 %v171
    %v173 = vand.u32 %v70, 4294901760
    %174 = vmatpush1.msra.mxu0 %v173
    %v175 = vand.u32 %v73, 4294901760
    %176 = vmatprep.subr.mxu0 %v175
    %v177 = vand.u32 %v72, 4294901760
    %178 = vmatpush1.msra.mxu0 %v177
    %179 = vmatprep.subr.mxu0 0.0
    %180 = vmatpush1.msra.mxu0 0.0
    %181 = vmatprep.subr.mxu0 0.0
    %182 = vmatpush1.msra.mxu0 0.0
    %183 = vmatprep.subr.mxu0 0.0
    %184 = vmatpush1.msra.mxu0 0.0
    %185 = vmatprep.subr.mxu0 0.0
    %186 = vmatpush1.msra.mxu0 0.0
    %187 = vmatprep.subr.mxu0 0.0
    %188 = vmatpush1.msra.mxu0 0.0
    %189 = vmatprep.subr.mxu0 0.0
    %190 = vmatpush1.msra.mxu0 0.0
    %191 = vmatprep.subr.mxu0 0.0
    %192 = vmatpush1.msra.mxu0 0.0
    %193 = vmatprep.subr.mxu0 0.0
    %194 = vmatpush1.msra.mxu0 0.0
    %195 = vmatprep.subr.mxu0 0.0
    %196 = vmatpush1.msra.mxu0 0.0
    %197 = vmatprep.subr.mxu0 0.0
    %198 = vmatpush1.msra.mxu0 0.0
    %199 = vmatprep.subr.mxu0 0.0
    %200 = vmatpush1.msra.mxu0 0.0
    %201 = vmatprep.subr.mxu0 0.0
    %202 = vmatpush1.msra.mxu0 0.0
    %203 = vmatprep.subr.mxu0 0.0
    %204 = vmatpush1.msra.mxu0 0.0
    %205 = vmatprep.subr.mxu0 0.0
    %206 = vmatpush1.msra.mxu0 0.0
    %207 = vmatprep.subr.mxu0 0.0
    %208 = vmatpush1.msra.mxu0 0.0
    %209 = vmatprep.subr.mxu0 0.0
    %210 = vmatpush1.msra.mxu0 0.0
    %211 = vmatprep.subr.mxu0 0.0
    %212 = vmatpush1.msra.mxu0 0.0
    %213 = vmatprep.subr.mxu0 0.0
    %214 = vmatpush1.msra.mxu0 0.0
    %215 = vmatprep.subr.mxu0 0.0
    %216 = vmatpush1.msra.mxu0 0.0
    %217 = vmatprep.subr.mxu0 0.0
    %218 = vmatpush1.msra.mxu0 0.0
    %219 = vmatprep.subr.mxu0 0.0
    %220 = vmatpush1.msra.mxu0 0.0
    %221 = vmatprep.subr.mxu0 0.0
    %222 = vmatpush1.msra.mxu0 0.0
    %223 = vmatprep.subr.mxu0 0.0
    %224 = vmatpush1.msra.mxu0 0.0
    %225 = vmatprep.subr.mxu0 0.0
    %226 = vmatpush1.msra.mxu0 0.0
    %227 = vmatprep.mubr.f32.mxu0 0.0
    %v228 = vand.u32 %v145, 4294901760
    %v229 = vsub.f32 %v145, %v228
    %v230 = vand.u32 %v229, 4294901760
    %v231 = vsub.f32 %v229, %v230
    %v232 = vand.u32 %v231, 4294901760
    %233 = vmatmul.mubr.f32.gmra.mrb[0].mxu0 %v232
    %v234 = vpop.f32.mrb[0].mxu0
    %v235 = vadd.f32 0.0, %v234
    %v236 = vpop.f32.mrb[0].mxu0
    %v237 = vadd.f32 0.0, %v236
    %238 = vdwg.mxu0
    %v239 = vand.u32 %v59, 4294901760
    %v240 = vsub.f32 %v59, %v239
    %v241 = vand.u32 %v240, 4294901760
    %v242 = vsub.f32 %v240, %v241
    %v243 = vand.u32 %v242, 4294901760
    %244 = vmatprep.subr.mxu0 %v243
    %v245 = vand.u32 %v58, 4294901760
    %v246 = vsub.f32 %v58, %v245
    %v247 = vand.u32 %v246, 4294901760
    %v248 = vsub.f32 %v246, %v247
    %v249 = vand.u32 %v248, 4294901760
    %250 = vmatpush1.msra.mxu0 %v249
    %v251 = vand.u32 %v61, 4294901760
    %v252 = vsub.f32 %v61, %v251
    %v253 = vand.u32 %v252, 4294901760
    %v254 = vsub.f32 %v252, %v253
    %v255 = vand.u32 %v254, 4294901760
    %256 = vmatprep.subr.mxu0 %v255
    %v257 = vand.u32 %v60, 4294901760
    %v258 = vsub.f32 %v60, %v257
    %v259 = vand.u32 %v258, 4294901760
    %v260 = vsub.f32 %v258, %v259
    %v261 = vand.u32 %v260, 4294901760
    %262 = vmatpush1.msra.mxu0 %v261
    %v263 = vand.u32 %v63, 4294901760
    %v264 = vsub.f32 %v63, %v263
    %v265 = vand.u32 %v264, 4294901760
    %v266 = vsub.f32 %v264, %v265
    %v267 = vand.u32 %v266, 4294901760
    %268 = vmatprep.subr.mxu0 %v267
    %v269 = vand.u32 %v62, 4294901760
    %v270 = vsub.f32 %v62, %v269
    %v271 = vand.u32 %v270, 4294901760
    %v272 = vsub.f32 %v270, %v271
    %v273 = vand.u32 %v272, 4294901760
    %274 = vmatpush1.msra.mxu0 %v273
    %v275 = vand.u32 %v65, 4294901760
    %v276 = vsub.f32 %v65, %v275
    %v277 = vand.u32 %v276, 4294901760
    %v278 = vsub.f32 %v276, %v277
    %v279 = vand.u32 %v278, 4294901760
    %280 = vmatprep.subr.mxu0 %v279
    %v281 = vand.u32 %v64, 4294901760
    %v282 = vsub.f32 %v64, %v281
    %v283 = vand.u32 %v282, 4294901760
    %v284 = vsub.f32 %v282, %v283
    %v285 = vand.u32 %v284, 4294901760
    %286 = vmatpush1.msra.mxu0 %v285
    %v287 = vand.u32 %v67, 4294901760
    %v288 = vsub.f32 %v67, %v287
    %v289 = vand.u32 %v288, 4294901760
    %v290 = vsub.f32 %v288, %v289
    %v291 = vand.u32 %v290, 4294901760
    %292 = vmatprep.subr.mxu0 %v291
    %v293 = vand.u32 %v66, 4294901760
    %v294 = vsub.f32 %v66, %v293
    %v295 = vand.u32 %v294, 4294901760
    %v296 = vsub.f32 %v294, %v295
    %v297 = vand.u32 %v296, 4294901760
    %298 = vmatpush1.msra.mxu0 %v297
    %v299 = vand.u32 %v69, 4294901760
    %v300 = vsub.f32 %v69, %v299
    %v301 = vand.u32 %v300, 4294901760
    %v302 = vsub.f32 %v300, %v301
    %v303 = vand.u32 %v302, 4294901760
    %304 = vmatprep.subr.mxu0 %v303
    %v305 = vand.u32 %v68, 4294901760
    %v306 = vsub.f32 %v68, %v305
    %v307 = vand.u32 %v306, 4294901760
    %v308 = vsub.f32 %v306, %v307
    %v309 = vand.u32 %v308, 4294901760
    %310 = vmatpush1.msra.mxu0 %v309
    %v311 = vand.u32 %v71, 4294901760
    %v312 = vsub.f32 %v71, %v311
    %v313 = vand.u32 %v312, 4294901760
    %v314 = vsub.f32 %v312, %v313
    %v315 = vand.u32 %v314, 4294901760
    %316 = vmatprep.subr.mxu0 %v315
    %v317 = vand.u32 %v70, 4294901760
    %v318 = vsub.f32 %v70, %v317
    %v319 = vand.u32 %v318, 4294901760
    %v320 = vsub.f32 %v318, %v319
    %v321 = vand.u32 %v320, 4294901760
    %322 = vmatpush1.msra.mxu0 %v321
    %v323 = vand.u32 %v73, 4294901760
    %v324 = vsub.f32 %v73, %v323
    %v325 = vand.u32 %v324, 4294901760
    %v326 = vsub.f32 %v324, %v325
    %v327 = vand.u32 %v326, 4294901760
    %328 = vmatprep.subr.mxu0 %v327
    %v329 = vand.u32 %v72, 4294901760
    %v330 = vsub.f32 %v72, %v329
    %v331 = vand.u32 %v330, 4294901760
    %v332 = vsub.f32 %v330, %v331
    %v333 = vand.u32 %v332, 4294901760
    %334 = vmatpush1.msra.mxu0 %v333
    %335 = vmatprep.subr.mxu0 0.0
    %336 = vmatpush1.msra.mxu0 0.0
    %337 = vmatprep.subr.mxu0 0.0
    %338 = vmatpush1.msra.mxu0 0.0
    %339 = vmatprep.subr.mxu0 0.0
    %340 = vmatpush1.msra.mxu0 0.0
    %341 = vmatprep.subr.mxu0 0.0
    %342 = vmatpush1.msra.mxu0 0.0
    %343 = vmatprep.subr.mxu0 0.0
    %344 = vmatpush1.msra.mxu0 0.0
    %345 = vmatprep.subr.mxu0 0.0
    %346 = vmatpush1.msra.mxu0 0.0
    %347 = vmatprep.subr.mxu0 0.0
    %348 = vmatpush1.msra.mxu0 0.0
    %349 = vmatprep.subr.mxu0 0.0
    %350 = vmatpush1.msra.mxu0 0.0
    %351 = vmatprep.subr.mxu0 0.0
    %352 = vmatpush1.msra.mxu0 0.0
    %353 = vmatprep.subr.mxu0 0.0
    %354 = vmatpush1.msra.mxu0 0.0
    %355 = vmatprep.subr.mxu0 0.0
    %356 = vmatpush1.msra.mxu0 0.0
    %357 = vmatprep.subr.mxu0 0.0
    %358 = vmatpush1.msra.mxu0 0.0
    %359 = vmatprep.subr.mxu0 0.0
    %360 = vmatpush1.msra.mxu0 0.0
    %361 = vmatprep.subr.mxu0 0.0
    %362 = vmatpush1.msra.mxu0 0.0
    %363 = vmatprep.subr.mxu0 0.0
    %364 = vmatpush1.msra.mxu0 0.0
    %365 = vmatprep.subr.mxu0 0.0
    %366 = vmatpush1.msra.mxu0 0.0
    %367 = vmatprep.subr.mxu0 0.0
    %368 = vmatpush1.msra.mxu0 0.0
    %369 = vmatprep.subr.mxu0 0.0
    %370 = vmatpush1.msra.mxu0 0.0
    %371 = vmatprep.subr.mxu0 0.0
    %372 = vmatpush1.msra.mxu0 0.0
    %373 = vmatprep.subr.mxu0 0.0
    %374 = vmatpush1.msra.mxu0 0.0
    %375 = vmatprep.subr.mxu0 0.0
    %376 = vmatpush1.msra.mxu0 0.0
    %377 = vmatprep.subr.mxu0 0.0
    %378 = vmatpush1.msra.mxu0 0.0
    %379 = vmatprep.subr.mxu0 0.0
    %380 = vmatpush1.msra.mxu0 0.0
    %381 = vmatprep.subr.mxu0 0.0
    %382 = vmatpush1.msra.mxu0 0.0
    %383 = vmatprep.mubr.f32.mxu0 0.0
    %v384 = vand.u32 %v145, 4294901760
    %385 = vmatmul.mubr.f32.gmra.mrb[0].mxu0 %v384
    %v386 = vpop.f32.mrb[0].mxu0
    %v387 = vadd.f32 %v235, %v386
    %v388 = vpop.f32.mrb[0].mxu0
    %v389 = vadd.f32 %v237, %v388
    %390 = vdwg.mxu0
    %v391 = vand.u32 %v59, 4294901760
    %v392 = vsub.f32 %v59, %v391
    %393 = vmatprep.subr.mxu0 %v392
    %v394 = vand.u32 %v58, 4294901760
    %v395 = vsub.f32 %v58, %v394
    %396 = vmatpush1.msra.mxu0 %v395
    %v397 = vand.u32 %v61, 4294901760
    %v398 = vsub.f32 %v61, %v397
    %399 = vmatprep.subr.mxu0 %v398
    %v400 = vand.u32 %v60, 4294901760
    %v401 = vsub.f32 %v60, %v400
    %402 = vmatpush1.msra.mxu0 %v401
    %v403 = vand.u32 %v63, 4294901760
    %v404 = vsub.f32 %v63, %v403
    %405 = vmatprep.subr.mxu0 %v404
    %v406 = vand.u32 %v62, 4294901760
    %v407 = vsub.f32 %v62, %v406
    %408 = vmatpush1.msra.mxu0 %v407
    %v409 = vand.u32 %v65, 4294901760
    %v410 = vsub.f32 %v65, %v409
    %411 = vmatprep.subr.mxu0 %v410
    %v412 = vand.u32 %v64, 4294901760
    %v413 = vsub.f32 %v64, %v412
    %414 = vmatpush1.msra.mxu0 %v413
    %v415 = vand.u32 %v67, 4294901760
    %v416 = vsub.f32 %v67, %v415
    %417 = vmatprep.subr.mxu0 %v416
    %v418 = vand.u32 %v66, 4294901760
    %v419 = vsub.f32 %v66, %v418
    %420 = vmatpush1.msra.mxu0 %v419
    %v421 = vand.u32 %v69, 4294901760
    %v422 = vsub.f32 %v69, %v421
    %423 = vmatprep.subr.mxu0 %v422
    %v424 = vand.u32 %v68, 4294901760
    %v425 = vsub.f32 %v68, %v424
    %426 = vmatpush1.msra.mxu0 %v425
    %v427 = vand.u32 %v71, 4294901760
    %v428 = vsub.f32 %v71, %v427
    %429 = vmatprep.subr.mxu0 %v428
    %v430 = vand.u32 %v70, 4294901760
    %v431 = vsub.f32 %v70, %v430
    %432 = vmatpush1.msra.mxu0 %v431
    %v433 = vand.u32 %v73, 4294901760
    %v434 = vsub.f32 %v73, %v433
    %435 = vmatprep.subr.mxu0 %v434
    %v436 = vand.u32 %v72, 4294901760
    %v437 = vsub.f32 %v72, %v436
    %438 = vmatpush1.msra.mxu0 %v437
    %439 = vmatprep.subr.mxu0 0.0
    %440 = vmatpush1.msra.mxu0 0.0
    %441 = vmatprep.subr.mxu0 0.0
    %442 = vmatpush1.msra.mxu0 0.0
    %443 = vmatprep.subr.mxu0 0.0
    %444 = vmatpush1.msra.mxu0 0.0
    %445 = vmatprep.subr.mxu0 0.0
    %446 = vmatpush1.msra.mxu0 0.0
    %447 = vmatprep.subr.mxu0 0.0
    %448 = vmatpush1.msra.mxu0 0.0
    %449 = vmatprep.subr.mxu0 0.0
    %450 = vmatpush1.msra.mxu0 0.0
    %451 = vmatprep.subr.mxu0 0.0
    %452 = vmatpush1.msra.mxu0 0.0
    %453 = vmatprep.subr.mxu0 0.0
    %454 = vmatpush1.msra.mxu0 0.0
    %455 = vmatprep.subr.mxu0 0.0
    %456 = vmatpush1.msra.mxu0 0.0
    %457 = vmatprep.subr.mxu0 0.0
    %458 = vmatpush1.msra.mxu0 0.0
    %459 = vmatprep.subr.mxu0 0.0
    %460 = vmatpush1.msra.mxu0 0.0
    %461 = vmatprep.subr.mxu0 0.0
    %462 = vmatpush1.msra.mxu0 0.0
    %463 = vmatprep.subr.mxu0 0.0
    %464 = vmatpush1.msra.mxu0 0.0
    %465 = vmatprep.subr.mxu0 0.0
    %466 = vmatpush1.msra.mxu0 0.0
    %467 = vmatprep.subr.mxu0 0.0
    %468 = vmatpush1.msra.mxu0 0.0
    %469 = vmatprep.subr.mxu0 0.0
    %470 = vmatpush1.msra.mxu0 0.0
    %471 = vmatprep.subr.mxu0 0.0
    %472 = vmatpush1.msra.mxu0 0.0
    %473 = vmatprep.subr.mxu0 0.0
    %474 = vmatpush1.msra.mxu0 0.0
    %475 = vmatprep.subr.mxu0 0.0
    %476 = vmatpush1.msra.mxu0 0.0
    %477 = vmatprep.subr.mxu0 0.0
    %478 = vmatpush1.msra.mxu0 0.0
    %479 = vmatprep.subr.mxu0 0.0
    %480 = vmatpush1.msra.mxu0 0.0
    %481 = vmatprep.subr.mxu0 0.0
    %482 = vmatpush1.msra.mxu0 0.0
    %483 = vmatprep.subr.mxu0 0.0
    %484 = vmatpush1.msra.mxu0 0.0
    %485 = vmatprep.subr.mxu0 0.0
    %486 = vmatpush1.msra.mxu0 0.0
    %487 = vmatprep.mubr.f32.mxu0 0.0
    %v488 = vand.u32 %v145, 4294901760
    %v489 = vsub.f32 %v145, %v488
    %490 = vmatmul.mubr.f32.gmra.mrb[0].mxu0 %v489
    %v491 = vpop.f32.mrb[0].mxu0
    %v492 = vadd.f32 %v387, %v491
    %v493 = vpop.f32.mrb[0].mxu0
    %v494 = vadd.f32 %v389, %v493
    %495 = vdwg.mxu0
    %v496 = vand.u32 %v59, 4294901760
    %497 = vmatprep.subr.mxu0 %v496
    %v498 = vand.u32 %v58, 4294901760
    %499 = vmatpush1.msra.mxu0 %v498
    %v500 = vand.u32 %v61, 4294901760
    %501 = vmatprep.subr.mxu0 %v500
    %v502 = vand.u32 %v60, 4294901760
    %503 = vmatpush1.msra.mxu0 %v502
    %v504 = vand.u32 %v63, 4294901760
    %505 = vmatprep.subr.mxu0 %v504
    %v506 = vand.u32 %v62, 4294901760
    %507 = vmatpush1.msra.mxu0 %v506
    %v508 = vand.u32 %v65, 4294901760
    %509 = vmatprep.subr.mxu0 %v508
    %v510 = vand.u32 %v64, 4294901760
    %511 = vmatpush1.msra.mxu0 %v510
    %v512 = vand.u32 %v67, 4294901760
    %513 = vmatprep.subr.mxu0 %v512
    %v514 = vand.u32 %v66, 4294901760
    %515 = vmatpush1.msra.mxu0 %v514
    %v516 = vand.u32 %v69, 4294901760
    %517 = vmatprep.subr.mxu0 %v516
    %v518 = vand.u32 %v68, 4294901760
    %519 = vmatpush1.msra.mxu0 %v518
    %v520 = vand.u32 %v71, 4294901760
    %521 = vmatprep.subr.mxu0 %v520
    %v522 = vand.u32 %v70, 4294901760
    %523 = vmatpush1.msra.mxu0 %v522
    %v524 = vand.u32 %v73, 4294901760
    %525 = vmatprep.subr.mxu0 %v524
    %v526 = vand.u32 %v72, 4294901760
    %527 = vmatpush1.msra.mxu0 %v526
    %528 = vmatprep.subr.mxu0 0.0
    %529 = vmatpush1.msra.mxu0 0.0
    %530 = vmatprep.subr.mxu0 0.0
    %531 = vmatpush1.msra.mxu0 0.0
    %532 = vmatprep.subr.mxu0 0.0
    %533 = vmatpush1.msra.mxu0 0.0
    %534 = vmatprep.subr.mxu0 0.0
    %535 = vmatpush1.msra.mxu0 0.0
    %536 = vmatprep.subr.mxu0 0.0
    %537 = vmatpush1.msra.mxu0 0.0
    %538 = vmatprep.subr.mxu0 0.0
    %539 = vmatpush1.msra.mxu0 0.0
    %540 = vmatprep.subr.mxu0 0.0
    %541 = vmatpush1.msra.mxu0 0.0
    %542 = vmatprep.subr.mxu0 0.0
    %543 = vmatpush1.msra.mxu0 0.0
    %544 = vmatprep.subr.mxu0 0.0
    %545 = vmatpush1.msra.mxu0 0.0
    %546 = vmatprep.subr.mxu0 0.0
    %547 = vmatpush1.msra.mxu0 0.0
    %548 = vmatprep.subr.mxu0 0.0
    %549 = vmatpush1.msra.mxu0 0.0
    %550 = vmatprep.subr.mxu0 0.0
    %551 = vmatpush1.msra.mxu0 0.0
    %552 = vmatprep.subr.mxu0 0.0
    %553 = vmatpush1.msra.mxu0 0.0
    %554 = vmatprep.subr.mxu0 0.0
    %555 = vmatpush1.msra.mxu0 0.0
    %556 = vmatprep.subr.mxu0 0.0
    %557 = vmatpush1.msra.mxu0 0.0
    %558 = vmatprep.subr.mxu0 0.0
    %559 = vmatpush1.msra.mxu0 0.0
    %560 = vmatprep.subr.mxu0 0.0
    %561 = vmatpush1.msra.mxu0 0.0
    %562 = vmatprep.subr.mxu0 0.0
    %563 = vmatpush1.msra.mxu0 0.0
    %564 = vmatprep.subr.mxu0 0.0
    %565 = vmatpush1.msra.mxu0 0.0
    %566 = vmatprep.subr.mxu0 0.0
    %567 = vmatpush1.msra.mxu0 0.0
    %568 = vmatprep.subr.mxu0 0.0
    %569 = vmatpush1.msra.mxu0 0.0
    %570 = vmatprep.subr.mxu0 0.0
    %571 = vmatpush1.msra.mxu0 0.0
    %572 = vmatprep.subr.mxu0 0.0
    %573 = vmatpush1.msra.mxu0 0.0
    %574 = vmatprep.subr.mxu0 0.0
    %575 = vmatpush1.msra.mxu0 0.0
    %576 = vmatprep.mubr.f32.mxu0 0.0
    %v577 = vand.u32 %v145, 4294901760
    %v578 = vsub.f32 %v145, %v577
    %v579 = vand.u32 %v578, 4294901760
    %580 = vmatmul.mubr.f32.gmra.mrb[0].mxu0 %v579
    %v581 = vpop.f32.mrb[0].mxu0
    %v582 = vadd.f32 %v492, %v581
    %v583 = vpop.f32.mrb[0].mxu0
    %v584 = vadd.f32 %v494, %v583
    %585 = vdwg.mxu0
    %v586 = vand.u32 %v59, 4294901760
    %v587 = vsub.f32 %v59, %v586
    %v588 = vand.u32 %v587, 4294901760
    %589 = vmatprep.subr.mxu0 %v588
    %v590 = vand.u32 %v58, 4294901760
    %v591 = vsub.f32 %v58, %v590
    %v592 = vand.u32 %v591, 4294901760
    %593 = vmatpush1.msra.mxu0 %v592
    %v594 = vand.u32 %v61, 4294901760
    %v595 = vsub.f32 %v61, %v594
    %v596 = vand.u32 %v595, 4294901760
    %597 = vmatprep.subr.mxu0 %v596
    %v598 = vand.u32 %v60, 4294901760
    %v599 = vsub.f32 %v60, %v598
    %v600 = vand.u32 %v599, 4294901760
    %601 = vmatpush1.msra.mxu0 %v600
    %v602 = vand.u32 %v63, 4294901760
    %v603 = vsub.f32 %v63, %v602
    %v604 = vand.u32 %v603, 4294901760
    %605 = vmatprep.subr.mxu0 %v604
    %v606 = vand.u32 %v62, 4294901760
    %v607 = vsub.f32 %v62, %v606
    %v608 = vand.u32 %v607, 4294901760
    %609 = vmatpush1.msra.mxu0 %v608
    %v610 = vand.u32 %v65, 4294901760
    %v611 = vsub.f32 %v65, %v610
    %v612 = vand.u32 %v611, 4294901760
    %613 = vmatprep.subr.mxu0 %v612
    %v614 = vand.u32 %v64, 4294901760
    %v615 = vsub.f32 %v64, %v614
    %v616 = vand.u32 %v615, 4294901760
    %617 = vmatpush1.msra.mxu0 %v616
    %v618 = vand.u32 %v67, 4294901760
    %v619 = vsub.f32 %v67, %v618
    %v620 = vand.u32 %v619, 4294901760
    %621 = vmatprep.subr.mxu0 %v620
    %v622 = vand.u32 %v66, 4294901760
    %v623 = vsub.f32 %v66, %v622
    %v624 = vand.u32 %v623, 4294901760
    %625 = vmatpush1.msra.mxu0 %v624
    %v626 = vand.u32 %v69, 4294901760
    %v627 = vsub.f32 %v69, %v626
    %v628 = vand.u32 %v627, 4294901760
    %629 = vmatprep.subr.mxu0 %v628
    %v630 = vand.u32 %v68, 4294901760
    %v631 = vsub.f32 %v68, %v630
    %v632 = vand.u32 %v631, 4294901760
    %633 = vmatpush1.msra.mxu0 %v632
    %v634 = vand.u32 %v71, 4294901760
    %v635 = vsub.f32 %v71, %v634
    %v636 = vand.u32 %v635, 4294901760
    %637 = vmatprep.subr.mxu0 %v636
    %v638 = vand.u32 %v70, 4294901760
    %v639 = vsub.f32 %v70, %v638
    %v640 = vand.u32 %v639, 4294901760
    %641 = vmatpush1.msra.mxu0 %v640
    %v642 = vand.u32 %v73, 4294901760
    %v643 = vsub.f32 %v73, %v642
    %v644 = vand.u32 %v643, 4294901760
    %645 = vmatprep.subr.mxu0 %v644
    %v646 = vand.u32 %v72, 4294901760
    %v647 = vsub.f32 %v72, %v646
    %v648 = vand.u32 %v647, 4294901760
    %649 = vmatpush1.msra.mxu0 %v648
    %650 = vmatprep.subr.mxu0 0.0
    %651 = vmatpush1.msra.mxu0 0.0
    %652 = vmatprep.subr.mxu0 0.0
    %653 = vmatpush1.msra.mxu0 0.0
    %654 = vmatprep.subr.mxu0 0.0
    %655 = vmatpush1.msra.mxu0 0.0
    %656 = vmatprep.subr.mxu0 0.0
    %657 = vmatpush1.msra.mxu0 0.0
    %658 = vmatprep.subr.mxu0 0.0
    %659 = vmatpush1.msra.mxu0 0.0
    %660 = vmatprep.subr.mxu0 0.0
    %661 = vmatpush1.msra.mxu0 0.0
    %662 = vmatprep.subr.mxu0 0.0
    %663 = vmatpush1.msra.mxu0 0.0
    %664 = vmatprep.subr.mxu0 0.0
    %665 = vmatpush1.msra.mxu0 0.0
    %666 = vmatprep.subr.mxu0 0.0
    %667 = vmatpush1.msra.mxu0 0.0
    %668 = vmatprep.subr.mxu0 0.0
    %669 = vmatpush1.msra.mxu0 0.0
    %670 = vmatprep.subr.mxu0 0.0
    %671 = vmatpush1.msra.mxu0 0.0
    %672 = vmatprep.subr.mxu0 0.0
    %673 = vmatpush1.msra.mxu0 0.0
    %674 = vmatprep.subr.mxu0 0.0
    %675 = vmatpush1.msra.mxu0 0.0
    %676 = vmatprep.subr.mxu0 0.0
    %677 = vmatpush1.msra.mxu0 0.0
    %678 = vmatprep.subr.mxu0 0.0
    %679 = vmatpush1.msra.mxu0 0.0
    %680 = vmatprep.subr.mxu0 0.0
    %681 = vmatpush1.msra.mxu0 0.0
    %682 = vmatprep.subr.mxu0 0.0
    %683 = vmatpush1.msra.mxu0 0.0
    %684 = vmatprep.subr.mxu0 0.0
    %685 = vmatpush1.msra.mxu0 0.0
    %686 = vmatprep.subr.mxu0 0.0
    %687 = vmatpush1.msra.mxu0 0.0
    %688 = vmatprep.subr.mxu0 0.0
    %689 = vmatpush1.msra.mxu0 0.0
    %690 = vmatprep.subr.mxu0 0.0
    %691 = vmatpush1.msra.mxu0 0.0
    %692 = vmatprep.subr.mxu0 0.0
    %693 = vmatpush1.msra.mxu0 0.0
    %694 = vmatprep.subr.mxu0 0.0
    %695 = vmatpush1.msra.mxu0 0.0
    %696 = vmatprep.subr.mxu0 0.0
    %697 = vmatpush1.msra.mxu0 0.0
    %698 = vmatprep.mubr.f32.mxu0 0.0
    %v699 = vand.u32 %v145, 4294901760
    %700 = vmatmul.mubr.f32.gmra.mrb[0].mxu0 %v699
    %v701 = vpop.f32.mrb[0].mxu0
    %v702 = vadd.f32 %v582, %v701
    %v703 = vpop.f32.mrb[0].mxu0
    %v704 = vadd.f32 %v584, %v703
    %705 = vdwg.mxu0
    %v706 = vand.u32 %v59, 4294901760
    %707 = vmatprep.subr.mxu0 %v706
    %v708 = vand.u32 %v58, 4294901760
    %709 = vmatpush1.msra.mxu0 %v708
    %v710 = vand.u32 %v61, 4294901760
    %711 = vmatprep.subr.mxu0 %v710
    %v712 = vand.u32 %v60, 4294901760
    %713 = vmatpush1.msra.mxu0 %v712
    %v714 = vand.u32 %v63, 4294901760
    %715 = vmatprep.subr.mxu0 %v714
    %v716 = vand.u32 %v62, 4294901760
    %717 = vmatpush1.msra.mxu0 %v716
    %v718 = vand.u32 %v65, 4294901760
    %719 = vmatprep.subr.mxu0 %v718
    %v720 = vand.u32 %v64, 4294901760
    %721 = vmatpush1.msra.mxu0 %v720
    %v722 = vand.u32 %v67, 4294901760
    %723 = vmatprep.subr.mxu0 %v722
    %v724 = vand.u32 %v66, 4294901760
    %725 = vmatpush1.msra.mxu0 %v724
    %v726 = vand.u32 %v69, 4294901760
    %727 = vmatprep.subr.mxu0 %v726
    %v728 = vand.u32 %v68, 4294901760
    %729 = vmatpush1.msra.mxu0 %v728
    %v730 = vand.u32 %v71, 4294901760
    %731 = vmatprep.subr.mxu0 %v730
    %v732 = vand.u32 %v70, 4294901760
    %733 = vmatpush1.msra.mxu0 %v732
    %v734 = vand.u32 %v73, 4294901760
    %735 = vmatprep.subr.mxu0 %v734
    %v736 = vand.u32 %v72, 4294901760
    %737 = vmatpush1.msra.mxu0 %v736
    %738 = vmatprep.subr.mxu0 0.0
    %739 = vmatpush1.msra.mxu0 0.0
    %740 = vmatprep.subr.mxu0 0.0
    %741 = vmatpush1.msra.mxu0 0.0
    %742 = vmatprep.subr.mxu0 0.0
    %743 = vmatpush1.msra.mxu0 0.0
    %744 = vmatprep.subr.mxu0 0.0
    %745 = vmatpush1.msra.mxu0 0.0
    %746 = vmatprep.subr.mxu0 0.0
    %747 = vmatpush1.msra.mxu0 0.0
    %748 = vmatprep.subr.mxu0 0.0
    %749 = vmatpush1.msra.mxu0 0.0
    %750 = vmatprep.subr.mxu0 0.0
    %751 = vmatpush1.msra.mxu0 0.0
    %752 = vmatprep.subr.mxu0 0.0
    %753 = vmatpush1.msra.mxu0 0.0
    %754 = vmatprep.subr.mxu0 0.0
    %755 = vmatpush1.msra.mxu0 0.0
    %756 = vmatprep.subr.mxu0 0.0
    %757 = vmatpush1.msra.mxu0 0.0
    %758 = vmatprep.subr.mxu0 0.0
    %759 = vmatpush1.msra.mxu0 0.0
    %760 = vmatprep.subr.mxu0 0.0
    %761 = vmatpush1.msra.mxu0 0.0
    %762 = vmatprep.subr.mxu0 0.0
    %763 = vmatpush1.msra.mxu0 0.0
    %764 = vmatprep.subr.mxu0 0.0
    %765 = vmatpush1.msra.mxu0 0.0
    %766 = vmatprep.subr.mxu0 0.0
    %767 = vmatpush1.msra.mxu0 0.0
    %768 = vmatprep.subr.mxu0 0.0
    %769 = vmatpush1.msra.mxu0 0.0
    %770 = vmatprep.subr.mxu0 0.0
    %771 = vmatpush1.msra.mxu0 0.0
    %772 = vmatprep.subr.mxu0 0.0
    %773 = vmatpush1.msra.mxu0 0.0
    %774 = vmatprep.subr.mxu0 0.0
    %775 = vmatpush1.msra.mxu0 0.0
    %776 = vmatprep.subr.mxu0 0.0
    %777 = vmatpush1.msra.mxu0 0.0
    %778 = vmatprep.subr.mxu0 0.0
    %779 = vmatpush1.msra.mxu0 0.0
    %780 = vmatprep.subr.mxu0 0.0
    %781 = vmatpush1.msra.mxu0 0.0
    %782 = vmatprep.subr.mxu0 0.0
    %783 = vmatpush1.msra.mxu0 0.0
    %784 = vmatprep.subr.mxu0 0.0
    %785 = vmatpush1.msra.mxu0 0.0
    %786 = vmatprep.mubr.f32.mxu0 0.0
    %v787 = vand.u32 %v145, 4294901760
    %788 = vmatmul.mubr.f32.gmra.mrb[0].mxu0 %v787
    %v789 = vpop.f32.mrb[0].mxu0
    %v790 = vadd.f32 %v702, %v789
    %v791 = vpop.f32.mrb[0].mxu0
    %v792 = vadd.f32 %v704, %v791
    %793 = vdwg.mxu0
    %v794 = vsel %vm141, %v790, 0.0
    %v795 = vsel %vm142, %v792, 0.0
    %v798 = vcombine.low %v794, %v795
    %800 = vst [vmem:[#allocation8] sm:$0xff] %v798
    %s801 = scalar_lea.vmem [#allocation2], 4
    %v802 = vld [vmem:[%s801] sm:$0xf]
    %v804 = vsel %vm84, %v802, 0
    %v806 = vand.u32 %v59, 4294901760
    %807 = vmatprep.subr.mxu0 %v806
    %v808 = vand.u32 %v58, 4294901760
    %809 = vmatpush1.msra.mxu0 %v808
    %v810 = vand.u32 %v61, 4294901760
    %811 = vmatprep.subr.mxu0 %v810
    %v812 = vand.u32 %v60, 4294901760
    %813 = vmatpush1.msra.mxu0 %v812
    %v814 = vand.u32 %v63, 4294901760
    %815 = vmatprep.subr.mxu0 %v814
    %v816 = vand.u32 %v62, 4294901760
    %817 = vmatpush1.msra.mxu0 %v816
    %v818 = vand.u32 %v65, 4294901760
    %819 = vmatprep.subr.mxu0 %v818
    %v820 = vand.u32 %v64, 4294901760
    %821 = vmatpush1.msra.mxu0 %v820
    %v822 = vand.u32 %v67, 4294901760
    %823 = vmatprep.subr.mxu0 %v822
    %v824 = vand.u32 %v66, 4294901760
    %825 = vmatpush1.msra.mxu0 %v824
    %v826 = vand.u32 %v69, 4294901760
    %827 = vmatprep.subr.mxu0 %v826
    %v828 = vand.u32 %v68, 4294901760
    %829 = vmatpush1.msra.mxu0 %v828
    %v830 = vand.u32 %v71, 4294901760
    %831 = vmatprep.subr.mxu0 %v830
    %v832 = vand.u32 %v70, 4294901760
    %833 = vmatpush1.msra.mxu0 %v832
    %v834 = vand.u32 %v73, 4294901760
    %835 = vmatprep.subr.mxu0 %v834
    %v836 = vand.u32 %v72, 4294901760
    %837 = vmatpush1.msra.mxu0 %v836
    %838 = vmatprep.subr.mxu0 0.0
    %839 = vmatpush1.msra.mxu0 0.0
    %840 = vmatprep.subr.mxu0 0.0
    %841 = vmatpush1.msra.mxu0 0.0
    %842 = vmatprep.subr.mxu0 0.0
    %843 = vmatpush1.msra.mxu0 0.0
    %844 = vmatprep.subr.mxu0 0.0
    %845 = vmatpush1.msra.mxu0 0.0
    %846 = vmatprep.subr.mxu0 0.0
    %847 = vmatpush1.msra.mxu0 0.0
    %848 = vmatprep.subr.mxu0 0.0
    %849 = vmatpush1.msra.mxu0 0.0
    %850 = vmatprep.subr.mxu0 0.0
    %851 = vmatpush1.msra.mxu0 0.0
    %852 = vmatprep.subr.mxu0 0.0
    %853 = vmatpush1.msra.mxu0 0.0
    %854 = vmatprep.subr.mxu0 0.0
    %855 = vmatpush1.msra.mxu0 0.0
    %856 = vmatprep.subr.mxu0 0.0
    %857 = vmatpush1.msra.mxu0 0.0
    %858 = vmatprep.subr.mxu0 0.0
    %859 = vmatpush1.msra.mxu0 0.0
    %860 = vmatprep.subr.mxu0 0.0
    %861 = vmatpush1.msra.mxu0 0.0
    %862 = vmatprep.subr.mxu0 0.0
    %863 = vmatpush1.msra.mxu0 0.0
    %864 = vmatprep.subr.mxu0 0.0
    %865 = vmatpush1.msra.mxu0 0.0
    %866 = vmatprep.subr.mxu0 0.0
    %867 = vmatpush1.msra.mxu0 0.0
    %868 = vmatprep.subr.mxu0 0.0
    %869 = vmatpush1.msra.mxu0 0.0
    %870 = vmatprep.subr.mxu0 0.0
    %871 = vmatpush1.msra.mxu0 0.0
    %872 = vmatprep.subr.mxu0 0.0
    %873 = vmatpush1.msra.mxu0 0.0
    %874 = vmatprep.subr.mxu0 0.0
    %875 = vmatpush1.msra.mxu0 0.0
    %876 = vmatprep.subr.mxu0 0.0
    %877 = vmatpush1.msra.mxu0 0.0
    %878 = vmatprep.subr.mxu0 0.0
    %879 = vmatpush1.msra.mxu0 0.0
    %880 = vmatprep.subr.mxu0 0.0
    %881 = vmatpush1.msra.mxu0 0.0
    %882 = vmatprep.subr.mxu0 0.0
    %883 = vmatpush1.msra.mxu0 0.0
    %884 = vmatprep.subr.mxu0 0.0
    %885 = vmatpush1.msra.mxu0 0.0
    %886 = vmatprep.mubr.f32.mxu0 0.0
    %v887 = vand.u32 %v804, 4294901760
    %v888 = vsub.f32 %v804, %v887
    %v889 = vand.u32 %v888, 4294901760
    %v890 = vsub.f32 %v888, %v889
    %v891 = vand.u32 %v890, 4294901760
    %892 = vmatmul.mubr.f32.gmra.mrb[0].mxu0 %v891
    %v893 = vpop.f32.mrb[0].mxu0
    %v894 = vadd.f32 0.0, %v893
    %v895 = vpop.f32.mrb[0].mxu0
    %v896 = vadd.f32 0.0, %v895
    %897 = vdwg.mxu0
    %v898 = vand.u32 %v59, 4294901760
    %v899 = vsub.f32 %v59, %v898
    %v900 = vand.u32 %v899, 4294901760
    %v901 = vsub.f32 %v899, %v900
    %v902 = vand.u32 %v901, 4294901760
    %903 = vmatprep.subr.mxu0 %v902
    %v904 = vand.u32 %v58, 4294901760
    %v905 = vsub.f32 %v58, %v904
    %v906 = vand.u32 %v905, 4294901760
    %v907 = vsub.f32 %v905, %v906
    %v908 = vand.u32 %v907, 4294901760
    %909 = vmatpush1.msra.mxu0 %v908
    %v910 = vand.u32 %v61, 4294901760
    %v911 = vsub.f32 %v61, %v910
    %v912 = vand.u32 %v911, 4294901760
    %v913 = vsub.f32 %v911, %v912
    %v914 = vand.u32 %v913, 4294901760
    %915 = vmatprep.subr.mxu0 %v914
    %v916 = vand.u32 %v60, 4294901760
    %v917 = vsub.f32 %v60, %v916
    %v918 = vand.u32 %v917, 4294901760
    %v919 = vsub.f32 %v917, %v918
    %v920 = vand.u32 %v919, 4294901760
    %921 = vmatpush1.msra.mxu0 %v920
    %v922 = vand.u32 %v63, 4294901760
    %v923 = vsub.f32 %v63, %v922
    %v924 = vand.u32 %v923, 4294901760
    %v925 = vsub.f32 %v923, %v924
    %v926 = vand.u32 %v925, 4294901760
    %927 = vmatprep.subr.mxu0 %v926
    %v928 = vand.u32 %v62, 4294901760
    %v929 = vsub.f32 %v62, %v928
    %v930 = vand.u32 %v929, 4294901760
    %v931 = vsub.f32 %v929, %v930
    %v932 = vand.u32 %v931, 4294901760
    %933 = vmatpush1.msra.mxu0 %v932
    %v934 = vand.u32 %v65, 4294901760
    %v935 = vsub.f32 %v65, %v934
    %v936 = vand.u32 %v935, 4294901760
    %v937 = vsub.f32 %v935, %v936
    %v938 = vand.u32 %v937, 4294901760
    %939 = vmatprep.subr.mxu0 %v938
    %v940 = vand.u32 %v64, 4294901760
    %v941 = vsub.f32 %v64, %v940
    %v942 = vand.u32 %v941, 4294901760
    %v943 = vsub.f32 %v941, %v942
    %v944 = vand.u32 %v943, 4294901760
    %945 = vmatpush1.msra.mxu0 %v944
    %v946 = vand.u32 %v67, 4294901760
    %v947 = vsub.f32 %v67, %v946
    %v948 = vand.u32 %v947, 4294901760
    %v949 = vsub.f32 %v947, %v948
    %v950 = vand.u32 %v949, 4294901760
    %951 = vmatprep.subr.mxu0 %v950
    %v952 = vand.u32 %v66, 4294901760
    %v953 = vsub.f32 %v66, %v952
    %v954 = vand.u32 %v953, 4294901760
    %v955 = vsub.f32 %v953, %v954
    %v956 = vand.u32 %v955, 4294901760
    %957 = vmatpush1.msra.mxu0 %v956
    %v958 = vand.u32 %v69, 4294901760
    %v959 = vsub.f32 %v69, %v958
    %v960 = vand.u32 %v959, 4294901760
    %v961 = vsub.f32 %v959, %v960
    %v962 = vand.u32 %v961, 4294901760
    %963 = vmatprep.subr.mxu0 %v962
    %v964 = vand.u32 %v68, 4294901760
    %v965 = vsub.f32 %v68, %v964
    %v966 = vand.u32 %v965, 4294901760
    %v967 = vsub.f32 %v965, %v966
    %v968 = vand.u32 %v967, 4294901760
    %969 = vmatpush1.msra.mxu0 %v968
    %v970 = vand.u32 %v71, 4294901760
    %v971 = vsub.f32 %v71, %v970
    %v972 = vand.u32 %v971, 4294901760
    %v973 = vsub.f32 %v971, %v972
    %v974 = vand.u32 %v973, 4294901760
    %975 = vmatprep.subr.mxu0 %v974
    %v976 = vand.u32 %v70, 4294901760
    %v977 = vsub.f32 %v70, %v976
    %v978 = vand.u32 %v977, 4294901760
    %v979 = vsub.f32 %v977, %v978
    %v980 = vand.u32 %v979, 4294901760
    %981 = vmatpush1.msra.mxu0 %v980
    %v982 = vand.u32 %v73, 4294901760
    %v983 = vsub.f32 %v73, %v982
    %v984 = vand.u32 %v983, 4294901760
    %v985 = vsub.f32 %v983, %v984
    %v986 = vand.u32 %v985, 4294901760
    %987 = vmatprep.subr.mxu0 %v986
    %v988 = vand.u32 %v72, 4294901760
    %v989 = vsub.f32 %v72, %v988
    %v990 = vand.u32 %v989, 4294901760
    %v991 = vsub.f32 %v989, %v990
    %v992 = vand.u32 %v991, 4294901760
    %993 = vmatpush1.msra.mxu0 %v992
    %994 = vmatprep.subr.mxu0 0.0
    %995 = vmatpush1.msra.mxu0 0.0
    %996 = vmatprep.subr.mxu0 0.0
    %997 = vmatpush1.msra.mxu0 0.0
    %998 = vmatprep.subr.mxu0 0.0
    %999 = vmatpush1.msra.mxu0 0.0
    %1000 = vmatprep.subr.mxu0 0.0
    %1001 = vmatpush1.msra.mxu0 0.0
    %1002 = vmatprep.subr.mxu0 0.0
    %1003 = vmatpush1.msra.mxu0 0.0
    %1004 = vmatprep.subr.mxu0 0.0
    %1005 = vmatpush1.msra.mxu0 0.0
    %1006 = vmatprep.subr.mxu0 0.0
    %1007 = vmatpush1.msra.mxu0 0.0
    %1008 = vmatprep.subr.mxu0 0.0
    %1009 = vmatpush1.msra.mxu0 0.0
    %1010 = vmatprep.subr.mxu0 0.0
    %1011 = vmatpush1.msra.mxu0 0.0
    %1012 = vmatprep.subr.mxu0 0.0
    %1013 = vmatpush1.msra.mxu0 0.0
    %1014 = vmatprep.subr.mxu0 0.0
    %1015 = vmatpush1.msra.mxu0 0.0
    %1016 = vmatprep.subr.mxu0 0.0
    %1017 = vmatpush1.msra.mxu0 0.0
    %1018 = vmatprep.subr.mxu0 0.0
    %1019 = vmatpush1.msra.mxu0 0.0
    %1020 = vmatprep.subr.mxu0 0.0
    %1021 = vmatpush1.msra.mxu0 0.0
    %1022 = vmatprep.subr.mxu0 0.0
    %1023 = vmatpush1.msra.mxu0 0.0
    %1024 = vmatprep.subr.mxu0 0.0
    %1025 = vmatpush1.msra.mxu0 0.0
    %1026 = vmatprep.subr.mxu0 0.0
    %1027 = vmatpush1.msra.mxu0 0.0
    %1028 = vmatprep.subr.mxu0 0.0
    %1029 = vmatpush1.msra.mxu0 0.0
    %1030 = vmatprep.subr.mxu0 0.0
    %1031 = vmatpush1.msra.mxu0 0.0
    %1032 = vmatprep.subr.mxu0 0.0
    %1033 = vmatpush1.msra.mxu0 0.0
    %1034 = vmatprep.subr.mxu0 0.0
    %1035 = vmatpush1.msra.mxu0 0.0
    %1036 = vmatprep.subr.mxu0 0.0
    %1037 = vmatpush1.msra.mxu0 0.0
    %1038 = vmatprep.subr.mxu0 0.0
    %1039 = vmatpush1.msra.mxu0 0.0
    %1040 = vmatprep.subr.mxu0 0.0
    %1041 = vmatpush1.msra.mxu0 0.0
    %1042 = vmatprep.mubr.f32.mxu0 0.0
    %v1043 = vand.u32 %v804, 4294901760
    %1044 = vmatmul.mubr.f32.gmra.mrb[0].mxu0 %v1043
    %v1045 = vpop.f32.mrb[0].mxu0
    %v1046 = vadd.f32 %v894, %v1045
    %v1047 = vpop.f32.mrb[0].mxu0
    %v1048 = vadd.f32 %v896, %v1047
    %1049 = vdwg.mxu0
    %v1050 = vand.u32 %v59, 4294901760
    %v1051 = vsub.f32 %v59, %v1050
    %1052 = vmatprep.subr.mxu0 %v1051
    %v1053 = vand.u32 %v58, 4294901760
    %v1054 = vsub.f32 %v58, %v1053
    %1055 = vmatpush1.msra.mxu0 %v1054
    %v1056 = vand.u32 %v61, 4294901760
    %v1057 = vsub.f32 %v61, %v1056
    %1058 = vmatprep.subr.mxu0 %v1057
    %v1059 = vand.u32 %v60, 4294901760
    %v1060 = vsub.f32 %v60, %v1059
    %1061 = vmatpush1.msra.mxu0 %v1060
    %v1062 = vand.u32 %v63, 4294901760
    %v1063 = vsub.f32 %v63, %v1062
    %1064 = vmatprep.subr.mxu0 %v1063
    %v1065 = vand.u32 %v62, 4294901760
    %v1066 = vsub.f32 %v62, %v1065
    %1067 = vmatpush1.msra.mxu0 %v1066
    %v1068 = vand.u32 %v65, 4294901760
    %v1069 = vsub.f32 %v65, %v1068
    %1070 = vmatprep.subr.mxu0 %v1069
    %v1071 = vand.u32 %v64, 4294901760
    %v1072 = vsub.f32 %v64, %v1071
    %1073 = vmatpush1.msra.mxu0 %v1072
    %v1074 = vand.u32 %v67, 4294901760
    %v1075 = vsub.f32 %v67, %v1074
    %1076 = vmatprep.subr.mxu0 %v1075
    %v1077 = vand.u32 %v66, 4294901760
    %v1078 = vsub.f32 %v66, %v1077
    %1079 = vmatpush1.msra.mxu0 %v1078
    %v1080 = vand.u32 %v69, 4294901760
    %v1081 = vsub.f32 %v69, %v1080
    %1082 = vmatprep.subr.mxu0 %v1081
    %v1083 = vand.u32 %v68, 4294901760
    %v1084 = vsub.f32 %v68, %v1083
    %1085 = vmatpush1.msra.mxu0 %v1084
    %v1086 = vand.u32 %v71, 4294901760
    %v1087 = vsub.f32 %v71, %v1086
    %1088 = vmatprep.subr.mxu0 %v1087
    %v1089 = vand.u32 %v70, 4294901760
    %v1090 = vsub.f32 %v70, %v1089
    %1091 = vmatpush1.msra.mxu0 %v1090
    %v1092 = vand.u32 %v73, 4294901760
    %v1093 = vsub.f32 %v73, %v1092
    %1094 = vmatprep.subr.mxu0 %v1093
    %v1095 = vand.u32 %v72, 4294901760
    %v1096 = vsub.f32 %v72, %v1095
    %1097 = vmatpush1.msra.mxu0 %v1096
    %1098 = vmatprep.subr.mxu0 0.0
    %1099 = vmatpush1.msra.mxu0 0.0
    %1100 = vmatprep.subr.mxu0 0.0
    %1101 = vmatpush1.msra.mxu0 0.0
    %1102 = vmatprep.subr.mxu0 0.0
    %1103 = vmatpush1.msra.mxu0 0.0
    %1104 = vmatprep.subr.mxu0 0.0
    %1105 = vmatpush1.msra.mxu0 0.0
    %1106 = vmatprep.subr.mxu0 0.0
    %1107 = vmatpush1.msra.mxu0 0.0
    %1108 = vmatprep.subr.mxu0 0.0
    %1109 = vmatpush1.msra.mxu0 0.0
    %1110 = vmatprep.subr.mxu0 0.0
    %1111 = vmatpush1.msra.mxu0 0.0
    %1112 = vmatprep.subr.mxu0 0.0
    %1113 = vmatpush1.msra.mxu0 0.0
    %1114 = vmatprep.subr.mxu0 0.0
    %1115 = vmatpush1.msra.mxu0 0.0
    %1116 = vmatprep.subr.mxu0 0.0
    %1117 = vmatpush1.msra.mxu0 0.0
    %1118 = vmatprep.subr.mxu0 0.0
    %1119 = vmatpush1.msra.mxu0 0.0
    %1120 = vmatprep.subr.mxu0 0.0
    %1121 = vmatpush1.msra.mxu0 0.0
    %1122 = vmatprep.subr.mxu0 0.0
    %1123 = vmatpush1.msra.mxu0 0.0
    %1124 = vmatprep.subr.mxu0 0.0
    %1125 = vmatpush1.msra.mxu0 0.0
    %1126 = vmatprep.subr.mxu0 0.0
    %1127 = vmatpush1.msra.mxu0 0.0
    %1128 = vmatprep.subr.mxu0 0.0
    %1129 = vmatpush1.msra.mxu0 0.0
    %1130 = vmatprep.subr.mxu0 0.0
    %1131 = vmatpush1.msra.mxu0 0.0
    %1132 = vmatprep.subr.mxu0 0.0
    %1133 = vmatpush1.msra.mxu0 0.0
    %1134 = vmatprep.subr.mxu0 0.0
    %1135 = vmatpush1.msra.mxu0 0.0
    %1136 = vmatprep.subr.mxu0 0.0
    %1137 = vmatpush1.msra.mxu0 0.0
    %1138 = vmatprep.subr.mxu0 0.0
    %1139 = vmatpush1.msra.mxu0 0.0
    %1140 = vmatprep.subr.mxu0 0.0
    %1141 = vmatpush1.msra.mxu0 0.0
    %1142 = vmatprep.subr.mxu0 0.0
    %1143 = vmatpush1.msra.mxu0 0.0
    %1144 = vmatprep.subr.mxu0 0.0
    %1145 = vmatpush1.msra.mxu0 0.0
    %1146 = vmatprep.mubr.f32.mxu0 0.0
    %v1147 = vand.u32 %v804, 4294901760
    %v1148 = vsub.f32 %v804, %v1147
    %1149 = vmatmul.mubr.f32.gmra.mrb[0].mxu0 %v1148
    %v1150 = vpop.f32.mrb[0].mxu0
    %v1151 = vadd.f32 %v1046, %v1150
    %v1152 = vpop.f32.mrb[0].mxu0
    %v1153 = vadd.f32 %v1048, %v1152
    %1154 = vdwg.mxu0
    %v1155 = vand.u32 %v59, 4294901760
    %1156 = vmatprep.subr.mxu0 %v1155
    %v1157 = vand.u32 %v58, 4294901760
    %1158 = vmatpush1.msra.mxu0 %v1157
    %v1159 = vand.u32 %v61, 4294901760
    %1160 = vmatprep.subr.mxu0 %v1159
    %v1161 = vand.u32 %v60, 4294901760
    %1162 = vmatpush1.msra.mxu0 %v1161
    %v1163 = vand.u32 %v63, 4294901760
    %1164 = vmatprep.subr.mxu0 %v1163
    %v1165 = vand.u32 %v62, 4294901760
    %1166 = vmatpush1.msra.mxu0 %v1165
    %v1167 = vand.u32 %v65, 4294901760
    %1168 = vmatprep.subr.mxu0 %v1167
    %v1169 = vand.u32 %v64, 4294901760
    %1170 = vmatpush1.msra.mxu0 %v1169
    %v1171 = vand.u32 %v67, 4294901760
    %1172 = vmatprep.subr.mxu0 %v1171
    %v1173 = vand.u32 %v66, 4294901760
    %1174 = vmatpush1.msra.mxu0 %v1173
    %v1175 = vand.u32 %v69, 4294901760
    %1176 = vmatprep.subr.mxu0 %v1175
    %v1177 = vand.u32 %v68, 4294901760
    %1178 = vmatpush1.msra.mxu0 %v1177
    %v1179 = vand.u32 %v71, 4294901760
    %1180 = vmatprep.subr.mxu0 %v1179
    %v1181 = vand.u32 %v70, 4294901760
    %1182 = vmatpush1.msra.mxu0 %v1181
    %v1183 = vand.u32 %v73, 4294901760
    %1184 = vmatprep.subr.mxu0 %v1183
    %v1185 = vand.u32 %v72, 4294901760
    %1186 = vmatpush1.msra.mxu0 %v1185
    %1187 = vmatprep.subr.mxu0 0.0
    %1188 = vmatpush1.msra.mxu0 0.0
    %1189 = vmatprep.subr.mxu0 0.0
    %1190 = vmatpush1.msra.mxu0 0.0
    %1191 = vmatprep.subr.mxu0 0.0
    %1192 = vmatpush1.msra.mxu0 0.0
    %1193 = vmatprep.subr.mxu0 0.0
    %1194 = vmatpush1.msra.mxu0 0.0
    %1195 = vmatprep.subr.mxu0 0.0
    %1196 = vmatpush1.msra.mxu0 0.0
    %1197 = vmatprep.subr.mxu0 0.0
    %1198 = vmatpush1.msra.mxu0 0.0
    %1199 = vmatprep.subr.mxu0 0.0
    %1200 = vmatpush1.msra.mxu0 0.0
    %1201 = vmatprep.subr.mxu0 0.0
    %1202 = vmatpush1.msra.mxu0 0.0
    %1203 = vmatprep.subr.mxu0 0.0
    %1204 = vmatpush1.msra.mxu0 0.0
    %1205 = vmatprep.subr.mxu0 0.0
    %1206 = vmatpush1.msra.mxu0 0.0
    %1207 = vmatprep.subr.mxu0 0.0
    %1208 = vmatpush1.msra.mxu0 0.0
    %1209 = vmatprep.subr.mxu0 0.0
    %1210 = vmatpush1.msra.mxu0 0.0
    %1211 = vmatprep.subr.mxu0 0.0
    %1212 = vmatpush1.msra.mxu0 0.0
    %1213 = vmatprep.subr.mxu0 0.0
    %1214 = vmatpush1.msra.mxu0 0.0
    %1215 = vmatprep.subr.mxu0 0.0
    %1216 = vmatpush1.msra.mxu0 0.0
    %1217 = vmatprep.subr.mxu0 0.0
    %1218 = vmatpush1.msra.mxu0 0.0
    %1219 = vmatprep.subr.mxu0 0.0
    %1220 = vmatpush1.msra.mxu0 0.0
    %1221 = vmatprep.subr.mxu0 0.0
    %1222 = vmatpush1.msra.mxu0 0.0
    %1223 = vmatprep.subr.mxu0 0.0
    %1224 = vmatpush1.msra.mxu0 0.0
    %1225 = vmatprep.subr.mxu0 0.0
    %1226 = vmatpush1.msra.mxu0 0.0
    %1227 = vmatprep.subr.mxu0 0.0
    %1228 = vmatpush1.msra.mxu0 0.0
    %1229 = vmatprep.subr.mxu0 0.0
    %1230 = vmatpush1.msra.mxu0 0.0
    %1231 = vmatprep.subr.mxu0 0.0
    %1232 = vmatpush1.msra.mxu0 0.0
    %1233 = vmatprep.subr.mxu0 0.0
    %1234 = vmatpush1.msra.mxu0 0.0
    %1235 = vmatprep.mubr.f32.mxu0 0.0
    %v1236 = vand.u32 %v804, 4294901760
    %v1237 = vsub.f32 %v804, %v1236
    %v1238 = vand.u32 %v1237, 4294901760
    %1239 = vmatmul.mubr.f32.gmra.mrb[0].mxu0 %v1238
    %v1240 = vpop.f32.mrb[0].mxu0
    %v1241 = vadd.f32 %v1151, %v1240
    %v1242 = vpop.f32.mrb[0].mxu0
    %v1243 = vadd.f32 %v1153, %v1242
    %1244 = vdwg.mxu0
    %v1245 = vand.u32 %v59, 4294901760
    %v1246 = vsub.f32 %v59, %v1245
    %v1247 = vand.u32 %v1246, 4294901760
    %1248 = vmatprep.subr.mxu0 %v1247
    %v1249 = vand.u32 %v58, 4294901760
    %v1250 = vsub.f32 %v58, %v1249
    %v1251 = vand.u32 %v1250, 4294901760
    %1252 = vmatpush1.msra.mxu0 %v1251
    %v1253 = vand.u32 %v61, 4294901760
    %v1254 = vsub.f32 %v61, %v1253
    %v1255 = vand.u32 %v1254, 4294901760
    %1256 = vmatprep.subr.mxu0 %v1255
    %v1257 = vand.u32 %v60, 4294901760
    %v1258 = vsub.f32 %v60, %v1257
    %v1259 = vand.u32 %v1258, 4294901760
    %1260 = vmatpush1.msra.mxu0 %v1259
    %v1261 = vand.u32 %v63, 4294901760
    %v1262 = vsub.f32 %v63, %v1261
    %v1263 = vand.u32 %v1262, 4294901760
    %1264 = vmatprep.subr.mxu0 %v1263
    %v1265 = vand.u32 %v62, 4294901760
    %v1266 = vsub.f32 %v62, %v1265
    %v1267 = vand.u32 %v1266, 4294901760
    %1268 = vmatpush1.msra.mxu0 %v1267
    %v1269 = vand.u32 %v65, 4294901760
    %v1270 = vsub.f32 %v65, %v1269
    %v1271 = vand.u32 %v1270, 4294901760
    %1272 = vmatprep.subr.mxu0 %v1271
    %v1273 = vand.u32 %v64, 4294901760
    %v1274 = vsub.f32 %v64, %v1273
    %v1275 = vand.u32 %v1274, 4294901760
    %1276 = vmatpush1.msra.mxu0 %v1275
    %v1277 = vand.u32 %v67, 4294901760
    %v1278 = vsub.f32 %v67, %v1277
    %v1279 = vand.u32 %v1278, 4294901760
    %1280 = vmatprep.subr.mxu0 %v1279
    %v1281 = vand.u32 %v66, 4294901760
    %v1282 = vsub.f32 %v66, %v1281
    %v1283 = vand.u32 %v1282, 4294901760
    %1284 = vmatpush1.msra.mxu0 %v1283
    %v1285 = vand.u32 %v69, 4294901760
    %v1286 = vsub.f32 %v69, %v1285
    %v1287 = vand.u32 %v1286, 4294901760
    %1288 = vmatprep.subr.mxu0 %v1287
    %v1289 = vand.u32 %v68, 4294901760
    %v1290 = vsub.f32 %v68, %v1289
    %v1291 = vand.u32 %v1290, 4294901760
    %1292 = vmatpush1.msra.mxu0 %v1291
    %v1293 = vand.u32 %v71, 4294901760
    %v1294 = vsub.f32 %v71, %v1293
    %v1295 = vand.u32 %v1294, 4294901760
    %1296 = vmatprep.subr.mxu0 %v1295
    %v1297 = vand.u32 %v70, 4294901760
    %v1298 = vsub.f32 %v70, %v1297
    %v1299 = vand.u32 %v1298, 4294901760
    %1300 = vmatpush1.msra.mxu0 %v1299
    %v1301 = vand.u32 %v73, 4294901760
    %v1302 = vsub.f32 %v73, %v1301
    %v1303 = vand.u32 %v1302, 4294901760
    %1304 = vmatprep.subr.mxu0 %v1303
    %v1305 = vand.u32 %v72, 4294901760
    %v1306 = vsub.f32 %v72, %v1305
    %v1307 = vand.u32 %v1306, 4294901760
    %1308 = vmatpush1.msra.mxu0 %v1307
    %1309 = vmatprep.subr.mxu0 0.0
    %1310 = vmatpush1.msra.mxu0 0.0
    %1311 = vmatprep.subr.mxu0 0.0
    %1312 = vmatpush1.msra.mxu0 0.0
    %1313 = vmatprep.subr.mxu0 0.0
    %1314 = vmatpush1.msra.mxu0 0.0
    %1315 = vmatprep.subr.mxu0 0.0
    %1316 = vmatpush1.msra.mxu0 0.0
    %1317 = vmatprep.subr.mxu0 0.0
    %1318 = vmatpush1.msra.mxu0 0.0
    %1319 = vmatprep.subr.mxu0 0.0
    %1320 = vmatpush1.msra.mxu0 0.0
    %1321 = vmatprep.subr.mxu0 0.0
    %1322 = vmatpush1.msra.mxu0 0.0
    %1323 = vmatprep.subr.mxu0 0.0
    %1324 = vmatpush1.msra.mxu0 0.0
    %1325 = vmatprep.subr.mxu0 0.0
    %1326 = vmatpush1.msra.mxu0 0.0
    %1327 = vmatprep.subr.mxu0 0.0
    %1328 = vmatpush1.msra.mxu0 0.0
    %1329 = vmatprep.subr.mxu0 0.0
    %1330 = vmatpush1.msra.mxu0 0.0
    %1331 = vmatprep.subr.mxu0 0.0
    %1332 = vmatpush1.msra.mxu0 0.0
    %1333 = vmatprep.subr.mxu0 0.0
    %1334 = vmatpush1.msra.mxu0 0.0
    %1335 = vmatprep.subr.mxu0 0.0
    %1336 = vmatpush1.msra.mxu0 0.0
    %1337 = vmatprep.subr.mxu0 0.0
    %1338 = vmatpush1.msra.mxu0 0.0
    %1339 = vmatprep.subr.mxu0 0.0
    %1340 = vmatpush1.msra.mxu0 0.0
    %1341 = vmatprep.subr.mxu0 0.0
    %1342 = vmatpush1.msra.mxu0 0.0
    %1343 = vmatprep.subr.mxu0 0.0
    %1344 = vmatpush1.msra.mxu0 0.0
    %1345 = vmatprep.subr.mxu0 0.0
    %1346 = vmatpush1.msra.mxu0 0.0
    %1347 = vmatprep.subr.mxu0 0.0
    %1348 = vmatpush1.msra.mxu0 0.0
    %1349 = vmatprep.subr.mxu0 0.0
    %1350 = vmatpush1.msra.mxu0 0.0
    %1351 = vmatprep.subr.mxu0 0.0
    %1352 = vmatpush1.msra.mxu0 0.0
    %1353 = vmatprep.subr.mxu0 0.0
    %1354 = vmatpush1.msra.mxu0 0.0
    %1355 = vmatprep.subr.mxu0 0.0
    %1356 = vmatpush1.msra.mxu0 0.0
    %1357 = vmatprep.mubr.f32.mxu0 0.0
    %v1358 = vand.u32 %v804, 4294901760
    %1359 = vmatmul.mubr.f32.gmra.mrb[0].mxu0 %v1358
    %v1360 = vpop.f32.mrb[0].mxu0
    %v1361 = vadd.f32 %v1241, %v1360
    %v1362 = vpop.f32.mrb[0].mxu0
    %v1363 = vadd.f32 %v1243, %v1362
    %1364 = vdwg.mxu0
    %v1365 = vand.u32 %v59, 4294901760
    %1366 = vmatprep.subr.mxu0 %v1365
    %v1367 = vand.u32 %v58, 4294901760
    %1368 = vmatpush1.msra.mxu0 %v1367
    %v1369 = vand.u32 %v61, 4294901760
    %1370 = vmatprep.subr.mxu0 %v1369
    %v1371 = vand.u32 %v60, 4294901760
    %1372 = vmatpush1.msra.mxu0 %v1371
    %v1373 = vand.u32 %v63, 4294901760
    %1374 = vmatprep.subr.mxu0 %v1373
    %v1375 = vand.u32 %v62, 4294901760
    %1376 = vmatpush1.msra.mxu0 %v1375
    %v1377 = vand.u32 %v65, 4294901760
    %1378 = vmatprep.subr.mxu0 %v1377
    %v1379 = vand.u32 %v64, 4294901760
    %1380 = vmatpush1.msra.mxu0 %v1379
    %v1381 = vand.u32 %v67, 4294901760
    %1382 = vmatprep.subr.mxu0 %v1381
    %v1383 = vand.u32 %v66, 4294901760
    %1384 = vmatpush1.msra.mxu0 %v1383
    %v1385 = vand.u32 %v69, 4294901760
    %1386 = vmatprep.subr.mxu0 %v1385
    %v1387 = vand.u32 %v68, 4294901760
    %1388 = vmatpush1.msra.mxu0 %v1387
    %v1389 = vand.u32 %v71, 4294901760
    %1390 = vmatprep.subr.mxu0 %v1389
    %v1391 = vand.u32 %v70, 4294901760
    %1392 = vmatpush1.msra.mxu0 %v1391
    %v1393 = vand.u32 %v73, 4294901760
    %1394 = vmatprep.subr.mxu0 %v1393
    %v1395 = vand.u32 %v72, 4294901760
    %1396 = vmatpush1.msra.mxu0 %v1395
    %1397 = vmatprep.subr.mxu0 0.0
    %1398 = vmatpush1.msra.mxu0 0.0
    %1399 = vmatprep.subr.mxu0 0.0
    %1400 = vmatpush1.msra.mxu0 0.0
    %1401 = vmatprep.subr.mxu0 0.0
    %1402 = vmatpush1.msra.mxu0 0.0
    %1403 = vmatprep.subr.mxu0 0.0
    %1404 = vmatpush1.msra.mxu0 0.0
    %1405 = vmatprep.subr.mxu0 0.0
    %1406 = vmatpush1.msra.mxu0 0.0
    %1407 = vmatprep.subr.mxu0 0.0
    %1408 = vmatpush1.msra.mxu0 0.0
    %1409 = vmatprep.subr.mxu0 0.0
    %1410 = vmatpush1.msra.mxu0 0.0
    %1411 = vmatprep.subr.mxu0 0.0
    %1412 = vmatpush1.msra.mxu0 0.0
    %1413 = vmatprep.subr.mxu0 0.0
    %1414 = vmatpush1.msra.mxu0 0.0
    %1415 = vmatprep.subr.mxu0 0.0
    %1416 = vmatpush1.msra.mxu0 0.0
    %1417 = vmatprep.subr.mxu0 0.0
    %1418 = vmatpush1.msra.mxu0 0.0
    %1419 = vmatprep.subr.mxu0 0.0
    %1420 = vmatpush1.msra.mxu0 0.0
    %1421 = vmatprep.subr.mxu0 0.0
    %1422 = vmatpush1.msra.mxu0 0.0
    %1423 = vmatprep.subr.mxu0 0.0
    %1424 = vmatpush1.msra.mxu0 0.0
    %1425 = vmatprep.subr.mxu0 0.0
    %1426 = vmatpush1.msra.mxu0 0.0
    %1427 = vmatprep.subr.mxu0 0.0
    %1428 = vmatpush1.msra.mxu0 0.0
    %1429 = vmatprep.subr.mxu0 0.0
    %1430 = vmatpush1.msra.mxu0 0.0
    %1431 = vmatprep.subr.mxu0 0.0
    %1432 = vmatpush1.msra.mxu0 0.0
    %1433 = vmatprep.subr.mxu0 0.0
    %1434 = vmatpush1.msra.mxu0 0.0
    %1435 = vmatprep.subr.mxu0 0.0
    %1436 = vmatpush1.msra.mxu0 0.0
    %1437 = vmatprep.subr.mxu0 0.0
    %1438 = vmatpush1.msra.mxu0 0.0
    %1439 = vmatprep.subr.mxu0 0.0
    %1440 = vmatpush1.msra.mxu0 0.0
    %1441 = vmatprep.subr.mxu0 0.0
    %1442 = vmatpush1.msra.mxu0 0.0
    %1443 = vmatprep.subr.mxu0 0.0
    %1444 = vmatpush1.msra.mxu0 0.0
    %1445 = vmatprep.mubr.f32.mxu0 0.0
    %v1446 = vand.u32 %v804, 4294901760
    %1447 = vmatmul.mubr.f32.gmra.mrb[0].mxu0 %v1446
    %v1448 = vpop.f32.mrb[0].mxu0
    %v1449 = vadd.f32 %v1361, %v1448
    %v1450 = vpop.f32.mrb[0].mxu0
    %v1451 = vadd.f32 %v1363, %v1450
    %1452 = vdwg.mxu0
    %v1453 = vsel %vm141, %v1449, 0.0
    %v1454 = vsel %vm142, %v1451, 0.0
    %v1457 = vcombine.low %v1453, %v1454
    %s1459 = scalar_lea.vmem [#allocation8], 8
    %1460 = vst [vmem:[%s1459] sm:$0xff] %v1457
    // Predicated region
    $region30: #{tpu_custom_call.1} parent=1 // pred_check
      _
    $region31: #{tpu_custom_call.1} parent=1 // pred_check_branch
      %1462 = sbr.rel (0) target = $region33
    $region32: #{tpu_custom_call.1} parent=1 // pred_region
      %s1464 = ssub.s32 256, 256
      %1465 = vsyncadd [#allocation4], %s1464
      %s1466 = sshll.u32 [#allocation8], 4
      %s1467 = int_to_ptr.vmem [resolvable:$true] %s1466
      %1472 = dma.vmem_to_hbm [thread:$0]  %s1467, 256, %s4, [#allocation4], 128, 128, 8
    $region33: #{tpu_custom_call.1} parent=1 // pred_fallthru
      _
    // Predicated region
    $region34: #{tpu_custom_call.1} parent=1 // pred_check
      _
    $region35: #{tpu_custom_call.1} parent=1 // pred_check_branch
      %1474 = sbr.rel (0) target = $region37
    $region36: #{tpu_custom_call.1} parent=1 // pred_region
      %1475 = dma.done [#allocation4], 256
    $region37: #{tpu_custom_call.1} parent=1 // pred_fallthru
      _
    %1476 = vsyncpa [#allocation3], 1
    %1477 = vsyncpa [#allocation6], 1
    %1478 = vsyncpa [#allocation4], 1

</llo_original>
